<compile_context>
chip_gen: v5e
topology: v5e:2x2
jax: 0.10.0
libtpu: 0.0.40
codegen_flags: <defaults>
</compile_context>

<pallas_src>
import functools

import jax
import jax.numpy as jnp
from jax.experimental import pallas as pl
from jax.experimental.pallas import tpu as pltpu

EPS = 1e-5  # nn.LayerNorm default


def _round_up(x, m):
    return (x + m - 1) // m * m


def _chan_layernorm(y, gamma, beta, c_true):
    """LayerNorm over the last (channel) dim, tolerant of zero-padded channels.

    Uses E[y^2] - mean^2 so zero-padded channel columns (y == 0, gamma == beta == 0)
    drop out of both sums; divide by the true channel count.  (The one-pass form can
    lose precision if |mean| >> std; activations here are O(1) so f32 is plenty.)
    """
    inv_c = 1.0 / c_true
    mean = jnp.sum(y, axis=-1, keepdims=True) * inv_c
    var = jnp.sum(y * y, axis=-1, keepdims=True) * inv_c - mean * mean
    return (y - mean) * jax.lax.rsqrt(var + EPS) * gamma + beta


def conv1d_block_kernel(x_ref, h_ref, w1_ref, b1_ref, g1_ref, be1_ref,
                        wd_ref, bd_ref, g2_ref, be2_ref, ws_ref, bs_ref,
                        alpha_ref, o_ref, y_ref, *,
                        kernel_size, dilation, pad_l, pad_r, hl,
                        t_tile, t_valid, cc_true):
    j = pl.program_id(1)
    t0 = j * t_tile                      # global time index of this tile's row 0
    a1 = alpha_ref[0]
    a2 = alpha_ref[1]
    mm_dt = w1_ref.dtype                 # bf16 when the opt-in fast path is enabled

    # ---- conv1x1 + PReLU + LN1 on the center rows; stage into the y scratch -----
    yc = jnp.dot(x_ref[0].astype(mm_dt), w1_ref[...],
                 preferred_element_type=jnp.float32) + b1_ref[...]
    yc = jnp.where(yc >= 0, yc, a1 * yc)
    yc = _chan_layernorm(yc, g1_ref[...], be1_ref[...], cc_true)
    # Rows past the true sequence end act as the depthwise conv's zero padding.
    row = jax.lax.broadcasted_iota(jnp.int32, (t_tile, 1), 0)
    yc = jnp.where(t0 + row < t_valid, yc, 0.0)
    y_ref[hl:hl + t_tile, :] = yc        # center region starts sublane-aligned

    # ---- same pipeline on the (few) halo rows, scattered around the center ------
    if pad_l + pad_r > 0:
        hp = h_ref.shape[2]
        yh = jnp.dot(h_ref[0, 0].astype(mm_dt), w1_ref[...],
                     preferred_element_type=jnp.float32) + b1_ref[...]
        yh = jnp.where(yh >= 0, yh, a1 * yh)
        yh = _chan_layernorm(yh, g1_ref[...], be1_ref[...], cc_true)
        # halo row r < pad_l  -> global t0 - pad_l + r   (left of the tile)
        # halo row r >= pad_l -> global t0 + t_tile + (r - pad_l)   (right of it)
        r = jax.lax.broadcasted_iota(jnp.int32, (hp, 1), 0)
        g = jnp.where(r < pad_l, t0 - pad_l + r, t0 + t_tile + (r - pad_l))
        valid = (r < pad_l + pad_r) & (g >= 0) & (g < t_valid)
        yh = jnp.where(valid, yh, 0.0)   # sequence-boundary zero padding
        if pad_l > 0:
            y_ref[hl - pad_l:hl, :] = yh[0:pad_l, :]
        if pad_r > 0:
            y_ref[hl + t_tile:hl + t_tile + pad_r, :] = yh[pad_l:pad_l + pad_r, :]

    # ---- depthwise conv: K static slices of the staged y buffer -----------------
    base = hl - pad_l
    acc = y_ref[base:base + t_tile, :] * wd_ref[0, :] + bd_ref[...]
    for k in range(1, kernel_size):
        off = base + k * dilation
        acc = acc + y_ref[off:off + t_tile, :] * wd_ref[k, :]

    # ---- PReLU 2 + LN2 + sconv (pointwise back to Cp) + residual ----------------
    acc = jnp.where(acc >= 0, acc, a2 * acc)
    acc = _chan_layernorm(acc, g2_ref[...], be2_ref[...], cc_true)
    out = jnp.dot(acc.astype(ws_ref.dtype), ws_ref[...],
                  preferred_element_type=jnp.float32) + bs_ref[...]
    o_ref[0] = (x_ref[0] + out).astype(o_ref.dtype)


def _vmem_bytes_estimate(tt, cp, ccp, k, hp, hl, hr, w_bytes):
    """Rough per-step VMEM footprint used to pick the time tile."""
    f4 = 4
    io_tiles = 4 * tt * cp * f4                              # 2x in + 2x out buffers
    halo = 2 * hp * cp * f4
    weights = 2 * (2 * cp * ccp * w_bytes + (k + 7) * ccp * f4 + cp * f4)
    ybuf = (hl + tt + hr) * ccp * f4
    temps = 3 * tt * max(ccp, cp) * f4                       # yc / acc / cast copies
    return io_tiles + halo + weights + ybuf + temps


def conv1d_block(x_btc, params, *, kernel_size, dilation, causal,
                 time_tile=512, matmul_dtype=jnp.float32):
    """x_btc: (B, T, Cin) float32.  Returns (B, T, Cin) float32."""
    B, T, Cin = x_btc.shape
    Cc = params["w1"].shape[1]
    K = kernel_size
    span = dilation * (K - 1)
    if causal:
        pad_l, pad_r = span, 0
    else:
        assert span % 2 == 0, "non-causal Conv1DBlock needs dilation*(K-1) even"
        pad_l = pad_r = span // 2

    Cp = _round_up(Cin, 128)                   # lane-dense channel padding
    Ccp = _round_up(Cc, 128)
    hl = _round_up(pad_l, 8)                   # center rows start sublane-aligned
    hr = _round_up(pad_r, 8)
    Hp = max(8, _round_up(pad_l + pad_r, 8))   # halo rows carried per tile (>= 8)
    w_bytes = 2 if matmul_dtype == jnp.bfloat16 else 4

    # ---- per-generation VMEM budget / time-tile selection ----------------------
    try:
        phys_vmem = int(getattr(pltpu.get_tpu_info(), "vmem_capacity_bytes",
                                64 * 1024 * 1024))
    except Exception:                           # interpret mode / older APIs
        phys_vmem = 64 * 1024 * 1024            # v7x is the smallest (64 MiB / TC)
    budget = int(phys_vmem * 0.45)
    vmem_limit = max(32 * 1024 * 1024,
                     min(int(phys_vmem * 0.8), 100 * 1024 * 1024))

    Tt = min(_round_up(T, 8), _round_up(time_tile, 8))
    while Tt > 64 and _vmem_bytes_estimate(Tt, Cp, Ccp, K, Hp, hl, hr,
                                           w_bytes) > budget:
        Tt = max(64, _round_up(Tt // 2, 8))
    n_t = pl.cdiv(T, Tt)
    if B * n_t < 2 and T > 8:                  # keep both v7x TensorCores busy
        Tt = _round_up(pl.cdiv(T, 2), 8)
        n_t = pl.cdiv(T, Tt)
    Tp = n_t * Tt                              # blocks tile (B, Tp, Cp) exactly

    # ---- single optional padding pass (time remainder + channel lanes, fused) ---
    if Tp != T or Cp != Cin:
        x_in = jnp.pad(x_btc, ((0, 0), (0, Tp - T), (0, Cp - Cin)))
    else:
        x_in = x_btc                            # no extra HBM pass

    # ---- tiny halo gather: pad_l rows before + pad_r rows after each tile -------
    starts = jnp.arange(n_t, dtype=jnp.int32) * Tt
    offs = jnp.concatenate([
        jnp.arange(-pad_l, 0, dtype=jnp.int32),
        jnp.arange(Tt, Tt + pad_r, dtype=jnp.int32),
        jnp.zeros((Hp - pad_l - pad_r,), jnp.int32)])
    idx = jnp.clip(starts[:, None] + offs[None, :], 0, Tp - 1)   # (n_t, Hp)
    halos = x_in[:, idx, :]                                       # (B, n_t, Hp, Cp)

    def padc(a, cols):                          # pad last dim to `cols`
        return jnp.pad(a, ((0, 0), (0, cols - a.shape[1])))

    w1 = jnp.pad(params["w1"], ((0, Cp - Cin), (0, Ccp - Cc))).astype(matmul_dtype)
    b1 = padc(params["b1"], Ccp)
    g1 = padc(params["g1"], Ccp)
    be1 = padc(params["be1"], Ccp)
    wd = padc(params["wd"], Ccp)
    bd = padc(params["bd"], Ccp)
    g2 = padc(params["g2"], Ccp)
    be2 = padc(params["be2"], Ccp)
    ws = jnp.pad(params["ws"], ((0, Ccp - Cc), (0, Cp - Cin))).astype(matmul_dtype)
    bs = padc(params["bs"], Cp)
    alphas = jnp.stack([params["a1"].reshape(()),
                        params["a2"].reshape(())]).astype(jnp.float32)

    kern = functools.partial(
        conv1d_block_kernel, kernel_size=K, dilation=dilation,
        pad_l=pad_l, pad_r=pad_r, hl=hl, t_tile=Tt, t_valid=T, cc_true=Cc)

    def const(shape):                           # weights resident across the grid
        return pl.BlockSpec(shape, lambda b, j: (0,) * len(shape))

    in_specs = [
        pl.BlockSpec((1, Tt, Cp), lambda b, j: (b, j, 0)),        # x center tile
        pl.BlockSpec((1, 1, Hp, Cp), lambda b, j: (b, j, 0, 0)),  # halo rows
        const((Cp, Ccp)),                                         # w1
        const((1, Ccp)),                                          # b1
        const((1, Ccp)),                                          # ln1 gamma
        const((1, Ccp)),                                          # ln1 beta
        const((K, Ccp)),                                          # dconv weight
        const((1, Ccp)),                                          # dconv bias
        const((1, Ccp)),                                          # ln2 gamma
        const((1, Ccp)),                                          # ln2 beta
        const((Ccp, Cp)),                                         # ws
        const((1, Cp)),                                           # bs
        pl.BlockSpec(memory_space=pltpu.MemorySpace.SMEM),        # prelu alphas
    ]

    out = pl.pallas_call(
        kern,
        out_shape=jax.ShapeDtypeStruct((B, Tp, Cp), jnp.float32),
        grid_spec=pltpu.PrefetchScalarGridSpec(
            num_scalar_prefetch=0,
            grid=(B, n_t),
            in_specs=in_specs,
            out_specs=pl.BlockSpec((1, Tt, Cp), lambda b, j: (b, j, 0)),
            scratch_shapes=[pltpu.VMEM((hl + Tt + hr, Ccp), jnp.float32)],
        ),
        compiler_params=pltpu.CompilerParams(
            dimension_semantics=("parallel", "parallel"),
            vmem_limit_bytes=vmem_limit),
    )(x_in, halos, w1, b1, g1, be1, wd, bd, g2, be2, ws, bs, alphas)

    if Tp != T or Cp != Cin:                    # only when lanes/time were padded
        out = out[:, :T, :Cin]
    return out


def reference_jax(x_btc, params, *, kernel_size, dilation, causal):
    """Plain-JAX reference mirroring the PyTorch semantics (sanity check)."""
    pad = dilation * (kernel_size - 1) if causal else dilation * (kernel_size - 1) // 2
    y = jnp.einsum("btc,cd->btd", x_btc, params["w1"]) + params["b1"]
    y = jnp.where(y >= 0, y, params["a1"][0, 0] * y)
    m = y.mean(-1, keepdims=True)
    v = ((y - m) ** 2).mean(-1, keepdims=True)
    y = (y - m) / jnp.sqrt(v + EPS) * params["g1"] + params["be1"]
    T = y.shape[1]
    acc = jnp.zeros_like(y)
    yp = jnp.pad(y, ((0, 0), (pad, pad), (0, 0)))
    for k in range(kernel_size):
        acc = acc + yp[:, k * dilation:k * dilation + T, :] * params["wd"][k]
    y = acc + params["bd"]
    y = jnp.where(y >= 0, y, params["a2"][0, 0] * y)
    m = y.mean(-1, keepdims=True)
    v = ((y - m) ** 2).mean(-1, keepdims=True)
    y = (y - m) / jnp.sqrt(v + EPS) * params["g2"] + params["be2"]
    out = jnp.einsum("btd,dc->btc", y, params["ws"]) + params["bs"]
    return x_btc + out


if __name__ == "__main__":
    def make_params(key, cin, cc, k):
        ks = jax.random.split(key, 10)
        return {
            "w1":  0.1 * jax.random.normal(ks[0], (cin, cc), jnp.float32),
            "b1":  0.1 * jax.random.normal(ks[1], (1, cc), jnp.float32),
            "a1":  jnp.full((1, 1), 0.25, jnp.float32),   # PReLU default init
            "g1":  1.0 + 0.1 * jax.random.normal(ks[2], (1, cc), jnp.float32),
            "be1": 0.1 * jax.random.normal(ks[3], (1, cc), jnp.float32),
            "wd":  0.1 * jax.random.normal(ks[4], (k, cc), jnp.float32),
            "bd":  0.1 * jax.random.normal(ks[5], (1, cc), jnp.float32),
            "a2":  jnp.full((1, 1), 0.25, jnp.float32),
            "g2":  1.0 + 0.1 * jax.random.normal(ks[6], (1, cc), jnp.float32),
            "be2": 0.1 * jax.random.normal(ks[7], (1, cc), jnp.float32),
            "ws":  0.1 * jax.random.normal(ks[8], (cc, cin), jnp.float32),
            "bs":  0.1 * jax.random.normal(ks[9], (1, cin), jnp.float32),
        }

    key = jax.random.PRNGKey(0)
    k_param, k_x1, k_x2 = jax.random.split(key, 3)

    # --- Config 1: small non-causal block (single time tile) ------------------
    B, Cin, Cc, T, K, DIL = 2, 64, 128, 16, 3, 1
    params = make_params(k_param, Cin, Cc, K)
    x_nct = jax.random.normal(k_x1, (B, Cin, T), jnp.float32)   # PyTorch NCW
    x_btc = jnp.transpose(x_nct, (0, 2, 1))                     # -> (B, T, C)
    out_btc = conv1d_block(x_btc, params, kernel_size=K, dilation=DIL,
                           causal=False)
    out_btc = jax.block_until_ready(out_btc)
    ref = reference_jax(x_btc, params, kernel_size=K, dilation=DIL, causal=False)
    assert jnp.allclose(out_btc, ref, atol=1e-4, rtol=1e-4), "non-causal mismatch"

    # --- Config 2: causal, dilated, multiple time tiles + ragged T (halo path) --
    B2, T2, DIL2 = 2, 40, 2
    params2 = make_params(k_param, Cin, Cc, K)
    x2 = jax.random.normal(k_x2, (B2, T2, Cin), jnp.float32)
    out2 = conv1d_block(x2, params2, kernel_size=K, dilation=DIL2, causal=True,
                        time_tile=16)
    out2 = jax.block_until_ready(out2)
    ref2 = reference_jax(x2, params2, kernel_size=K, dilation=DIL2, causal=True)
    assert jnp.allclose(out2, ref2, atol=1e-4, rtol=1e-4), "causal mismatch"

    # --- Config 3: opt-in bf16 matmul operands (looser tolerance) --------------
    out_bf16 = conv1d_block(x_btc, params, kernel_size=K, dilation=DIL,
                            causal=False, matmul_dtype=jnp.bfloat16)
    out_bf16 = jax.block_until_ready(out_bf16)
    assert jnp.allclose(out_bf16, ref, atol=1e-1, rtol=1e-1), "bf16 path mismatch"

    print("KERNEL_OK")
</pallas_src>

<mosaic_0001>
module attributes {stable_mosaic.version = 11 : i64} {
  func.func @conv1d_block_kernel(%arg0: i32, %arg1: i32, %arg2: memref<1x16x128xf32, #tpu.memory_space<vmem>>, %arg3: memref<1x1x8x128xf32, #tpu.memory_space<vmem>>, %arg4: memref<128x128xf32, #tpu.memory_space<vmem>>, %arg5: memref<1x128xf32, #tpu.memory_space<vmem>>, %arg6: memref<1x128xf32, #tpu.memory_space<vmem>>, %arg7: memref<1x128xf32, #tpu.memory_space<vmem>>, %arg8: memref<3x128xf32, #tpu.memory_space<vmem>>, %arg9: memref<1x128xf32, #tpu.memory_space<vmem>>, %arg10: memref<1x128xf32, #tpu.memory_space<vmem>>, %arg11: memref<1x128xf32, #tpu.memory_space<vmem>>, %arg12: memref<128x128xf32, #tpu.memory_space<vmem>>, %arg13: memref<1x128xf32, #tpu.memory_space<vmem>>, %arg14: memref<2xf32, #tpu.memory_space<smem>>, %arg15: memref<1x16x128xf32, #tpu.memory_space<vmem>>, %arg16: memref<32x128xf32, #tpu.memory_space<vmem>>) attributes {dimension_semantics = [#tpu.dimension_semantics<parallel>, #tpu.dimension_semantics<parallel>], iteration_bounds = array<i64: 2, 1>, scalar_prefetch = 0 : i64, scratch_operands = 1 : i64, tpu.core_type = #tpu.core_type<tc>, window_params = [{transform_indices = @transform_0, window_bounds = array<i64: 1, 16, 128>}, {transform_indices = @transform_1, window_bounds = array<i64: 1, 1, 8, 128>}, {pipeline_mode = #tpu.pipeline_mode<synchronous>, transform_indices = @transform_2, window_bounds = array<i64: 128, 128>}, {pipeline_mode = #tpu.pipeline_mode<synchronous>, transform_indices = @transform_3, window_bounds = array<i64: 1, 128>}, {pipeline_mode = #tpu.pipeline_mode<synchronous>, transform_indices = @transform_4, window_bounds = array<i64: 1, 128>}, {pipeline_mode = #tpu.pipeline_mode<synchronous>, transform_indices = @transform_5, window_bounds = array<i64: 1, 128>}, {pipeline_mode = #tpu.pipeline_mode<synchronous>, transform_indices = @transform_6, window_bounds = array<i64: 3, 128>}, {pipeline_mode = #tpu.pipeline_mode<synchronous>, transform_indices = @transform_7, window_bounds = array<i64: 1, 128>}, {pipeline_mode = #tpu.pipeline_mode<synchronous>, transform_indices = @transform_8, window_bounds = array<i64: 1, 128>}, {pipeline_mode = #tpu.pipeline_mode<synchronous>, transform_indices = @transform_9, window_bounds = array<i64: 1, 128>}, {pipeline_mode = #tpu.pipeline_mode<synchronous>, transform_indices = @transform_10, window_bounds = array<i64: 128, 128>}, {pipeline_mode = #tpu.pipeline_mode<synchronous>, transform_indices = @transform_11, window_bounds = array<i64: 1, 128>}, {transform_indices = @transform_12, window_bounds = array<i64: 2>}, {transform_indices = @transform_13, window_bounds = array<i64: 1, 16, 128>}]} {
    %c16_i32 = arith.constant 16 : i32
    %0 = arith.muli %arg1, %c16_i32 : i32
    %c0 = arith.constant 0 : index
    %1 = memref.load %arg14[%c0] : memref<2xf32, #tpu.memory_space<smem>>
    %c1 = arith.constant 1 : index
    %2 = memref.load %arg14[%c1] : memref<2xf32, #tpu.memory_space<smem>>
    %c0_0 = arith.constant 0 : index
    %c0_1 = arith.constant 0 : index
    %c0_2 = arith.constant 0 : index
    %3 = vector.load %arg2[%c0_0, %c0_1, %c0_2] : memref<1x16x128xf32, #tpu.memory_space<vmem>>, vector<1x16x128xf32>
    %4 = vector.shape_cast %3 : vector<1x16x128xf32> to vector<16x128xf32>
    %c0_3 = arith.constant 0 : index
    %c0_4 = arith.constant 0 : index
    %5 = vector.load %arg4[%c0_3, %c0_4] : memref<128x128xf32, #tpu.memory_space<vmem>>, vector<128x128xf32>
    %cst = arith.constant dense<0.000000e+00> : vector<16x128xf32>
    %6 = tpu.matmul %4, %5, %cst {dimension_numbers = #tpu.dot_dimension_numbers<[1], [0], [0], [1], [0, 0, 1, 1], [], []>} : vector<16x128xf32>, vector<128x128xf32>, vector<16x128xf32> -> vector<16x128xf32>
    %c0_5 = arith.constant 0 : index
    %c0_6 = arith.constant 0 : index
    %7 = vector.load %arg5[%c0_5, %c0_6] : memref<1x128xf32, #tpu.memory_space<vmem>>, vector<1x128xf32>
    %8 = vector.broadcast %7 : vector<1x128xf32> to vector<16x128xf32>
    %9 = arith.addf %6, %8 : vector<16x128xf32>
    %cst_7 = arith.constant 0.000000e+00 : f32
    %10 = vector.broadcast %cst_7 : f32 to vector<16x128xf32>
    %11 = arith.cmpf oge, %9, %10 : vector<16x128xf32>
    %12 = vector.broadcast %1 : f32 to vector<16x128xf32>
    %13 = arith.mulf %12, %9 : vector<16x128xf32>
    %14 = arith.select %11, %9, %13 : vector<16x128xi1>, vector<16x128xf32>
    %c0_8 = arith.constant 0 : index
    %c0_9 = arith.constant 0 : index
    %15 = vector.load %arg6[%c0_8, %c0_9] : memref<1x128xf32, #tpu.memory_space<vmem>>, vector<1x128xf32>
    %c0_10 = arith.constant 0 : index
    %c0_11 = arith.constant 0 : index
    %16 = vector.load %arg7[%c0_10, %c0_11] : memref<1x128xf32, #tpu.memory_space<vmem>>, vector<1x128xf32>
    %cst_12 = arith.constant dense<0.000000e+00> : vector<16xf32>
    %17 = vector.multi_reduction <add>, %14, %cst_12 [1] : vector<16x128xf32> to vector<16xf32>
    %18 = vector.shape_cast %17 : vector<16xf32> to vector<16x1xf32>
    %cst_13 = arith.constant 7.812500e-03 : f32
    %19 = vector.broadcast %cst_13 : f32 to vector<16x1xf32>
    %20 = arith.mulf %18, %19 : vector<16x1xf32>
    %21 = arith.mulf %14, %14 : vector<16x128xf32>
    %cst_14 = arith.constant dense<0.000000e+00> : vector<16xf32>
    %22 = vector.multi_reduction <add>, %21, %cst_14 [1] : vector<16x128xf32> to vector<16xf32>
    %23 = vector.shape_cast %22 : vector<16xf32> to vector<16x1xf32>
    %cst_15 = arith.constant 7.812500e-03 : f32
    %24 = vector.broadcast %cst_15 : f32 to vector<16x1xf32>
    %25 = arith.mulf %23, %24 : vector<16x1xf32>
    %26 = arith.mulf %20, %20 : vector<16x1xf32>
    %27 = arith.subf %25, %26 : vector<16x1xf32>
    %28 = vector.broadcast %20 : vector<16x1xf32> to vector<16x128xf32>
    %29 = arith.subf %14, %28 : vector<16x128xf32>
    %cst_16 = arith.constant 9.99999974E-6 : f32
    %30 = vector.broadcast %cst_16 : f32 to vector<16x1xf32>
    %31 = arith.addf %27, %30 : vector<16x1xf32>
    %32 = math.rsqrt %31 : vector<16x1xf32>
    %33 = vector.broadcast %32 : vector<16x1xf32> to vector<16x128xf32>
    %34 = arith.mulf %29, %33 : vector<16x128xf32>
    %35 = vector.broadcast %15 : vector<1x128xf32> to vector<16x128xf32>
    %36 = arith.mulf %34, %35 : vector<16x128xf32>
    %37 = vector.broadcast %16 : vector<1x128xf32> to vector<16x128xf32>
    %38 = arith.addf %36, %37 : vector<16x128xf32>
    %39 = tpu.iota {dimensions = array<i32: 0>} : vector<16x1xi32>
    %40 = vector.broadcast %0 : i32 to vector<16x1xi32>
    %41 = arith.addi %40, %39 : vector<16x1xi32>
    %c16_i32_17 = arith.constant 16 : i32
    %42 = vector.broadcast %c16_i32_17 : i32 to vector<16x1xi32>
    %43 = arith.cmpi slt, %41, %42 : vector<16x1xi32>
    %cst_18 = arith.constant 0.000000e+00 : f32
    %44 = vector.shape_cast %43 : vector<16x1xi1> to vector<16x1xi1>
    %45 = vector.broadcast %44 : vector<16x1xi1> to vector<16x128xi1>
    %46 = vector.broadcast %cst_18 : f32 to vector<16x128xf32>
    %47 = arith.select %45, %38, %46 : vector<16x128xi1>, vector<16x128xf32>
    %c8 = arith.constant 8 : index
    %c0_19 = arith.constant 0 : index
    %48 = vector.load %arg16[%c8, %c0_19] : memref<32x128xf32, #tpu.memory_space<vmem>>, vector<16x128xf32>
    tpu.vector_store %arg16[%c8, %c0_19], %47 {strides = array<i32>} : memref<32x128xf32, #tpu.memory_space<vmem>>, vector<16x128xf32>,
    %c0_20 = arith.constant 0 : index
    %c0_21 = arith.constant 0 : index
    %c0_22 = arith.constant 0 : index
    %c0_23 = arith.constant 0 : index
    %49 = vector.load %arg3[%c0_20, %c0_21, %c0_22, %c0_23] : memref<1x1x8x128xf32, #tpu.memory_space<vmem>>, vector<1x1x8x128xf32>
    %50 = vector.shape_cast %49 : vector<1x1x8x128xf32> to vector<8x128xf32>
    %c0_24 = arith.constant 0 : index
    %c0_25 = arith.constant 0 : index
    %51 = vector.load %arg4[%c0_24, %c0_25] : memref<128x128xf32, #tpu.memory_space<vmem>>, vector<128x128xf32>
    %cst_26 = arith.constant dense<0.000000e+00> : vector<8x128xf32>
    %52 = tpu.matmul %50, %51, %cst_26 {dimension_numbers = #tpu.dot_dimension_numbers<[1], [0], [0], [1], [0, 0, 1, 1], [], []>} : vector<8x128xf32>, vector<128x128xf32>, vector<8x128xf32> -> vector<8x128xf32>
    %c0_27 = arith.constant 0 : index
    %c0_28 = arith.constant 0 : index
    %53 = vector.load %arg5[%c0_27, %c0_28] : memref<1x128xf32, #tpu.memory_space<vmem>>, vector<1x128xf32>
    %54 = vector.broadcast %53 : vector<1x128xf32> to vector<8x128xf32>
    %55 = arith.addf %52, %54 : vector<8x128xf32>
    %cst_29 = arith.constant 0.000000e+00 : f32
    %56 = vector.broadcast %cst_29 : f32 to vector<8x128xf32>
    %57 = arith.cmpf oge, %55, %56 : vector<8x128xf32>
    %58 = vector.broadcast %1 : f32 to vector<8x128xf32>
    %59 = arith.mulf %58, %55 : vector<8x128xf32>
    %60 = arith.select %57, %55, %59 : vector<8x128xi1>, vector<8x128xf32>
    %c0_30 = arith.constant 0 : index
    %c0_31 = arith.constant 0 : index
    %61 = vector.load %arg6[%c0_30, %c0_31] : memref<1x128xf32, #tpu.memory_space<vmem>>, vector<1x128xf32>
    %c0_32 = arith.constant 0 : index
    %c0_33 = arith.constant 0 : index
    %62 = vector.load %arg7[%c0_32, %c0_33] : memref<1x128xf32, #tpu.memory_space<vmem>>, vector<1x128xf32>
    %cst_34 = arith.constant dense<0.000000e+00> : vector<8xf32>
    %63 = vector.multi_reduction <add>, %60, %cst_34 [1] : vector<8x128xf32> to vector<8xf32>
    %64 = vector.shape_cast %63 : vector<8xf32> to vector<8x1xf32>
    %cst_35 = arith.constant 7.812500e-03 : f32
    %65 = vector.broadcast %cst_35 : f32 to vector<8x1xf32>
    %66 = arith.mulf %64, %65 : vector<8x1xf32>
    %67 = arith.mulf %60, %60 : vector<8x128xf32>
    %cst_36 = arith.constant dense<0.000000e+00> : vector<8xf32>
    %68 = vector.multi_reduction <add>, %67, %cst_36 [1] : vector<8x128xf32> to vector<8xf32>
    %69 = vector.shape_cast %68 : vector<8xf32> to vector<8x1xf32>
    %cst_37 = arith.constant 7.812500e-03 : f32
    %70 = vector.broadcast %cst_37 : f32 to vector<8x1xf32>
    %71 = arith.mulf %69, %70 : vector<8x1xf32>
    %72 = arith.mulf %66, %66 : vector<8x1xf32>
    %73 = arith.subf %71, %72 : vector<8x1xf32>
    %74 = vector.broadcast %66 : vector<8x1xf32> to vector<8x128xf32>
    %75 = arith.subf %60, %74 : vector<8x128xf32>
    %cst_38 = arith.constant 9.99999974E-6 : f32
    %76 = vector.broadcast %cst_38 : f32 to vector<8x1xf32>
    %77 = arith.addf %73, %76 : vector<8x1xf32>
    %78 = math.rsqrt %77 : vector<8x1xf32>
    %79 = vector.broadcast %78 : vector<8x1xf32> to vector<8x128xf32>
    %80 = arith.mulf %75, %79 : vector<8x128xf32>
    %81 = vector.broadcast %61 : vector<1x128xf32> to vector<8x128xf32>
    %82 = arith.mulf %80, %81 : vector<8x128xf32>
    %83 = vector.broadcast %62 : vector<1x128xf32> to vector<8x128xf32>
    %84 = arith.addf %82, %83 : vector<8x128xf32>
    %85 = tpu.iota {dimensions = array<i32: 0>} : vector<8x1xi32>
    %c1_i32 = arith.constant 1 : i32
    %86 = vector.broadcast %c1_i32 : i32 to vector<8x1xi32>
    %87 = arith.cmpi slt, %85, %86 : vector<8x1xi32>
    %c1_i32_39 = arith.constant 1 : i32
    %88 = arith.subi %0, %c1_i32_39 : i32
    %89 = vector.broadcast %88 : i32 to vector<8x1xi32>
    %90 = arith.addi %89, %85 : vector<8x1xi32>
    %c16_i32_40 = arith.constant 16 : i32
    %91 = arith.addi %0, %c16_i32_40 : i32
    %c1_i32_41 = arith.constant 1 : i32
    %92 = vector.broadcast %c1_i32_41 : i32 to vector<8x1xi32>
    %93 = arith.subi %85, %92 : vector<8x1xi32>
    %94 = vector.broadcast %91 : i32 to vector<8x1xi32>
    %95 = arith.addi %94, %93 : vector<8x1xi32>
    %96 = arith.select %87, %90, %95 : vector<8x1xi1>, vector<8x1xi32>
    %c2_i32 = arith.constant 2 : i32
    %97 = vector.broadcast %c2_i32 : i32 to vector<8x1xi32>
    %98 = arith.cmpi slt, %85, %97 : vector<8x1xi32>
    %c0_i32 = arith.constant 0 : i32
    %99 = vector.broadcast %c0_i32 : i32 to vector<8x1xi32>
    %100 = arith.cmpi sge, %96, %99 : vector<8x1xi32>
    %101 = arith.andi %98, %100 : vector<8x1xi1>
    %c16_i32_42 = arith.constant 16 : i32
    %102 = vector.broadcast %c16_i32_42 : i32 to vector<8x1xi32>
    %103 = arith.cmpi slt, %96, %102 : vector<8x1xi32>
    %104 = arith.andi %101, %103 : vector<8x1xi1>
    %cst_43 = arith.constant 0.000000e+00 : f32
    %105 = vector.shape_cast %104 : vector<8x1xi1> to vector<8x1xi1>
    %106 = vector.broadcast %105 : vector<8x1xi1> to vector<8x128xi1>
    %107 = vector.broadcast %cst_43 : f32 to vector<8x128xf32>
    %108 = arith.select %106, %84, %107 : vector<8x128xi1>, vector<8x128xf32>
    %109 = vector.extract_strided_slice %108 {offsets = [0, 0], sizes = [1, 128], strides = [1, 1]} : vector<8x128xf32> to vector<1x128xf32>
    %c7 = arith.constant 7 : index
    %c0_44 = arith.constant 0 : index
    %110 = vector.load %arg16[%c7, %c0_44] : memref<32x128xf32, #tpu.memory_space<vmem>>, vector<1x128xf32>
    tpu.vector_store %arg16[%c7, %c0_44], %109 {strides = array<i32>} : memref<32x128xf32, #tpu.memory_space<vmem>>, vector<1x128xf32>,
    %111 = vector.extract_strided_slice %108 {offsets = [1, 0], sizes = [1, 128], strides = [1, 1]} : vector<8x128xf32> to vector<1x128xf32>
    %c24 = arith.constant 24 : index
    %c0_45 = arith.constant 0 : index
    %112 = vector.load %arg16[%c24, %c0_45] : memref<32x128xf32, #tpu.memory_space<vmem>>, vector<1x128xf32>
    tpu.vector_store %arg16[%c24, %c0_45], %111 {strides = array<i32>} : memref<32x128xf32, #tpu.memory_space<vmem>>, vector<1x128xf32>,
    %c7_46 = arith.constant 7 : index
    %c0_47 = arith.constant 0 : index
    %113 = vector.load %arg16[%c7_46, %c0_47] : memref<32x128xf32, #tpu.memory_space<vmem>>, vector<16x128xf32>
    %c0_48 = arith.constant 0 : index
    %c0_49 = arith.constant 0 : index
    %114 = vector.load %arg8[%c0_48, %c0_49] : memref<3x128xf32, #tpu.memory_space<vmem>>, vector<1x128xf32>
    %115 = vector.shape_cast %114 : vector<1x128xf32> to vector<128xf32>
    %116 = vector.shape_cast %115 : vector<128xf32> to vector<1x128xf32>
    %117 = vector.broadcast %116 : vector<1x128xf32> to vector<16x128xf32>
    %118 = arith.mulf %113, %117 : vector<16x128xf32>
    %c0_50 = arith.constant 0 : index
    %c0_51 = arith.constant 0 : index
    %119 = vector.load %arg9[%c0_50, %c0_51] : memref<1x128xf32, #tpu.memory_space<vmem>>, vector<1x128xf32>
    %120 = vector.broadcast %119 : vector<1x128xf32> to vector<16x128xf32>
    %121 = arith.addf %118, %120 : vector<16x128xf32>
    %c8_52 = arith.constant 8 : index
    %c0_53 = arith.constant 0 : index
    %122 = vector.load %arg16[%c8_52, %c0_53] : memref<32x128xf32, #tpu.memory_space<vmem>>, vector<16x128xf32>
    %c1_54 = arith.constant 1 : index
    %c0_55 = arith.constant 0 : index
    %123 = vector.load %arg8[%c1_54, %c0_55] : memref<3x128xf32, #tpu.memory_space<vmem>>, vector<1x128xf32>
    %124 = vector.shape_cast %123 : vector<1x128xf32> to vector<128xf32>
    %125 = vector.shape_cast %124 : vector<128xf32> to vector<1x128xf32>
    %126 = vector.broadcast %125 : vector<1x128xf32> to vector<16x128xf32>
    %127 = arith.mulf %122, %126 : vector<16x128xf32>
    %128 = arith.addf %121, %127 : vector<16x128xf32>
    %c9 = arith.constant 9 : index
    %c0_56 = arith.constant 0 : index
    %129 = vector.load %arg16[%c9, %c0_56] : memref<32x128xf32, #tpu.memory_space<vmem>>, vector<16x128xf32>
    %c2 = arith.constant 2 : index
    %c0_57 = arith.constant 0 : index
    %130 = vector.load %arg8[%c2, %c0_57] : memref<3x128xf32, #tpu.memory_space<vmem>>, vector<1x128xf32>
    %131 = vector.shape_cast %130 : vector<1x128xf32> to vector<128xf32>
    %132 = vector.shape_cast %131 : vector<128xf32> to vector<1x128xf32>
    %133 = vector.broadcast %132 : vector<1x128xf32> to vector<16x128xf32>
    %134 = arith.mulf %129, %133 : vector<16x128xf32>
    %135 = arith.addf %128, %134 : vector<16x128xf32>
    %cst_58 = arith.constant 0.000000e+00 : f32
    %136 = vector.broadcast %cst_58 : f32 to vector<16x128xf32>
    %137 = arith.cmpf oge, %135, %136 : vector<16x128xf32>
    %138 = vector.broadcast %2 : f32 to vector<16x128xf32>
    %139 = arith.mulf %138, %135 : vector<16x128xf32>
    %140 = arith.select %137, %135, %139 : vector<16x128xi1>, vector<16x128xf32>
    %c0_59 = arith.constant 0 : index
    %c0_60 = arith.constant 0 : index
    %141 = vector.load %arg10[%c0_59, %c0_60] : memref<1x128xf32, #tpu.memory_space<vmem>>, vector<1x128xf32>
    %c0_61 = arith.constant 0 : index
    %c0_62 = arith.constant 0 : index
    %142 = vector.load %arg11[%c0_61, %c0_62] : memref<1x128xf32, #tpu.memory_space<vmem>>, vector<1x128xf32>
    %cst_63 = arith.constant dense<0.000000e+00> : vector<16xf32>
    %143 = vector.multi_reduction <add>, %140, %cst_63 [1] : vector<16x128xf32> to vector<16xf32>
    %144 = vector.shape_cast %143 : vector<16xf32> to vector<16x1xf32>
    %cst_64 = arith.constant 7.812500e-03 : f32
    %145 = vector.broadcast %cst_64 : f32 to vector<16x1xf32>
    %146 = arith.mulf %144, %145 : vector<16x1xf32>
    %147 = arith.mulf %140, %140 : vector<16x128xf32>
    %cst_65 = arith.constant dense<0.000000e+00> : vector<16xf32>
    %148 = vector.multi_reduction <add>, %147, %cst_65 [1] : vector<16x128xf32> to vector<16xf32>
    %149 = vector.shape_cast %148 : vector<16xf32> to vector<16x1xf32>
    %cst_66 = arith.constant 7.812500e-03 : f32
    %150 = vector.broadcast %cst_66 : f32 to vector<16x1xf32>
    %151 = arith.mulf %149, %150 : vector<16x1xf32>
    %152 = arith.mulf %146, %146 : vector<16x1xf32>
    %153 = arith.subf %151, %152 : vector<16x1xf32>
    %154 = vector.broadcast %146 : vector<16x1xf32> to vector<16x128xf32>
    %155 = arith.subf %140, %154 : vector<16x128xf32>
    %cst_67 = arith.constant 9.99999974E-6 : f32
    %156 = vector.broadcast %cst_67 : f32 to vector<16x1xf32>
    %157 = arith.addf %153, %156 : vector<16x1xf32>
    %158 = math.rsqrt %157 : vector<16x1xf32>
    %159 = vector.broadcast %158 : vector<16x1xf32> to vector<16x128xf32>
    %160 = arith.mulf %155, %159 : vector<16x128xf32>
    %161 = vector.broadcast %141 : vector<1x128xf32> to vector<16x128xf32>
    %162 = arith.mulf %160, %161 : vector<16x128xf32>
    %163 = vector.broadcast %142 : vector<1x128xf32> to vector<16x128xf32>
    %164 = arith.addf %162, %163 : vector<16x128xf32>
    %c0_68 = arith.constant 0 : index
    %c0_69 = arith.constant 0 : index
    %165 = vector.load %arg12[%c0_68, %c0_69] : memref<128x128xf32, #tpu.memory_space<vmem>>, vector<128x128xf32>
    %cst_70 = arith.constant dense<0.000000e+00> : vector<16x128xf32>
    %166 = tpu.matmul %164, %165, %cst_70 {dimension_numbers = #tpu.dot_dimension_numbers<[1], [0], [0], [1], [0, 0, 1, 1], [], []>} : vector<16x128xf32>, vector<128x128xf32>, vector<16x128xf32> -> vector<16x128xf32>
    %c0_71 = arith.constant 0 : index
    %c0_72 = arith.constant 0 : index
    %167 = vector.load %arg13[%c0_71, %c0_72] : memref<1x128xf32, #tpu.memory_space<vmem>>, vector<1x128xf32>
    %168 = vector.broadcast %167 : vector<1x128xf32> to vector<16x128xf32>
    %169 = arith.addf %166, %168 : vector<16x128xf32>
    %c0_73 = arith.constant 0 : index
    %c0_74 = arith.constant 0 : index
    %c0_75 = arith.constant 0 : index
    %170 = vector.load %arg2[%c0_73, %c0_74, %c0_75] : memref<1x16x128xf32, #tpu.memory_space<vmem>>, vector<1x16x128xf32>
    %171 = vector.shape_cast %170 : vector<1x16x128xf32> to vector<16x128xf32>
    %172 = arith.addf %171, %169 : vector<16x128xf32>
    %c0_76 = arith.constant 0 : index
    %c0_77 = arith.constant 0 : index
    %c0_78 = arith.constant 0 : index
    %173 = vector.load %arg15[%c0_76, %c0_77, %c0_78] : memref<1x16x128xf32, #tpu.memory_space<vmem>>, vector<1x16x128xf32>
    %174 = vector.shape_cast %173 : vector<1x16x128xf32> to vector<16x128xf32>
    %175 = vector.shape_cast %172 : vector<16x128xf32> to vector<1x16x128xf32>
    tpu.vector_store %arg15[%c0_76, %c0_77, %c0_78], %175 {strides = array<i32>} : memref<1x16x128xf32, #tpu.memory_space<vmem>>, vector<1x16x128xf32>,
    return
  }
  func.func @transform_0(%arg0: i32, %arg1: i32) -> (i32, i32, i32) {
    %c0_i32 = arith.constant 0 : i32
    %c0_i32_0 = arith.constant 0 : i32
    return %arg0, %arg1, %c0_i32 : i32, i32, i32
  }
  func.func @transform_1(%arg0: i32, %arg1: i32) -> (i32, i32, i32, i32) {
    %c0_i32 = arith.constant 0 : i32
    %c0_i32_0 = arith.constant 0 : i32
    %c0_i32_1 = arith.constant 0 : i32
    return %arg0, %arg1, %c0_i32, %c0_i32_0 : i32, i32, i32, i32
  }
  func.func @transform_2(%arg0: i32, %arg1: i32) -> (i32, i32) {
    %c0_i32 = arith.constant 0 : i32
    %c0_i32_0 = arith.constant 0 : i32
    %c0_i32_1 = arith.constant 0 : i32
    return %c0_i32, %c0_i32_0 : i32, i32
  }
  func.func @transform_3(%arg0: i32, %arg1: i32) -> (i32, i32) {
    %c0_i32 = arith.constant 0 : i32
    %c0_i32_0 = arith.constant 0 : i32
    %c0_i32_1 = arith.constant 0 : i32
    return %c0_i32, %c0_i32_0 : i32, i32
  }
  func.func @transform_4(%arg0: i32, %arg1: i32) -> (i32, i32) {
    %c0_i32 = arith.constant 0 : i32
    %c0_i32_0 = arith.constant 0 : i32
    %c0_i32_1 = arith.constant 0 : i32
    return %c0_i32, %c0_i32_0 : i32, i32
  }
  func.func @transform_5(%arg0: i32, %arg1: i32) -> (i32, i32) {
    %c0_i32 = arith.constant 0 : i32
    %c0_i32_0 = arith.constant 0 : i32
    %c0_i32_1 = arith.constant 0 : i32
    return %c0_i32, %c0_i32_0 : i32, i32
  }
  func.func @transform_6(%arg0: i32, %arg1: i32) -> (i32, i32) {
    %c0_i32 = arith.constant 0 : i32
    %c0_i32_0 = arith.constant 0 : i32
    %c0_i32_1 = arith.constant 0 : i32
    return %c0_i32, %c0_i32_0 : i32, i32
  }
  func.func @transform_7(%arg0: i32, %arg1: i32) -> (i32, i32) {
    %c0_i32 = arith.constant 0 : i32
    %c0_i32_0 = arith.constant 0 : i32
    %c0_i32_1 = arith.constant 0 : i32
    return %c0_i32, %c0_i32_0 : i32, i32
  }
  func.func @transform_8(%arg0: i32, %arg1: i32) -> (i32, i32) {
    %c0_i32 = arith.constant 0 : i32
    %c0_i32_0 = arith.constant 0 : i32
    %c0_i32_1 = arith.constant 0 : i32
    return %c0_i32, %c0_i32_0 : i32, i32
  }
  func.func @transform_9(%arg0: i32, %arg1: i32) -> (i32, i32) {
    %c0_i32 = arith.constant 0 : i32
    %c0_i32_0 = arith.constant 0 : i32
    %c0_i32_1 = arith.constant 0 : i32
    return %c0_i32, %c0_i32_0 : i32, i32
  }
  func.func @transform_10(%arg0: i32, %arg1: i32) -> (i32, i32) {
    %c0_i32 = arith.constant 0 : i32
    %c0_i32_0 = arith.constant 0 : i32
    %c0_i32_1 = arith.constant 0 : i32
    return %c0_i32, %c0_i32_0 : i32, i32
  }
  func.func @transform_11(%arg0: i32, %arg1: i32) -> (i32, i32) {
    %c0_i32 = arith.constant 0 : i32
    %c0_i32_0 = arith.constant 0 : i32
    %c0_i32_1 = arith.constant 0 : i32
    return %c0_i32, %c0_i32_0 : i32, i32
  }
  func.func @transform_12(%arg0: i32, %arg1: i32) -> i32 {
    %c0_i32 = arith.constant 0 : i32
    %c0_i32_0 = arith.constant 0 : i32
    return %c0_i32 : i32
  }
  func.func @transform_13(%arg0: i32, %arg1: i32) -> (i32, i32, i32) {
    %c0_i32 = arith.constant 0 : i32
    %c0_i32_0 = arith.constant 0 : i32
    return %arg0, %arg1, %c0_i32 : i32, i32, i32
  }
}

</mosaic_0001>

<llo_original>
// kernel: tpu_custom_call.1
$region0: #{tpu_custom_call.1}
  #allocation0 [shape = 'u32[]', space=smem, size = 0x4, offset = 0x4, fixed_abs, tag = 'smem constant byte address 0x4 - core index']
  #allocation1 [shape = 'u32[72,128]{1,0:T(1,128)}', space=vmem, size = 0x9000, scoped, tag = 'internal scratch']
  #allocation2 [shape = 'f32[32,128]{1,0:T(8,128)}', space=vmem, size = 0x4000, scoped, tag = 'scratch operand']
  %s0 = inlined_call_operand.hbm [shape: f32[2,16,128], index: 0, kind: input, shape index: {}]
  %s1 = inlined_call_operand.hbm [shape: f32[2,1,8,128], index: 1, kind: input, shape index: {}]
  %s2 = inlined_call_operand.hbm [shape: f32[128,128], index: 2, kind: input, shape index: {}]
  %s3 = inlined_call_operand.vmem [shape: f32[1,128], index: 3, kind: input, shape index: {}]
  %s4 = inlined_call_operand.hbm [shape: f32[1,128], index: 4, kind: input, shape index: {}]
  %s5 = inlined_call_operand.hbm [shape: f32[1,128], index: 5, kind: input, shape index: {}]
  %s6 = inlined_call_operand.vmem [shape: f32[3,128], index: 6, kind: input, shape index: {}]
  %s7 = inlined_call_operand.vmem [shape: f32[1,128], index: 7, kind: input, shape index: {}]
  %s8 = inlined_call_operand.vmem [shape: f32[1,128], index: 8, kind: input, shape index: {}]
  %s9 = inlined_call_operand.vmem [shape: f32[1,128], index: 9, kind: input, shape index: {}]
  %s10 = inlined_call_operand.hbm [shape: f32[128,128], index: 10, kind: input, shape index: {}]
  %s11 = inlined_call_operand.vmem [shape: f32[1,128], index: 11, kind: input, shape index: {}]
  %s12 = inlined_call_operand.vmem [shape: f32[2], index: 12, kind: input, shape index: {}]
  %s13 = inlined_call_operand.hbm [shape: f32[2,16,128], index: 13, kind: output, shape index: {}]
  %s14 = sld [smem:[#allocation0]]
  $region113: #{tpu_custom_call.1} parent=0
    _
  %s16 = ssub.s32 1, %s14
  %s17 = scalar_select 0, %s16, %s14
  $region1: #{tpu_custom_call.1} parent=0
    #allocation3 [shape = 'u8[16384]{0}', space=vmem, size = 0x4000, scoped, tag = 'input window, operand 0']
    #allocation4 [shape = 's32[2]{0}', space=sflag, size = 0x8, scoped, tag = 'scoped memory for tpu_custom_call.1']
    #allocation5 [shape = 's32[2]{0}', space=sflag, size = 0x8, scoped, tag = 'scoped memory for tpu_custom_call.1']
    #allocation6 [shape = 's32[2]{0}', space=sflag, size = 0x8, scoped, tag = 'scoped memory for tpu_custom_call.1']
    #allocation7 [shape = 'u8[8192]{0}', space=vmem, size = 0x2000, scoped, tag = 'input window, operand 1']
    #allocation8 [shape = 's32[2]{0}', space=sflag, size = 0x8, scoped, tag = 'scoped memory for tpu_custom_call.1']
    #allocation9 [shape = 'u8[65536]{0}', space=vmem, size = 0x10000, scoped, tag = 'input window, operand 2, single buffered']
    #allocation10 [shape = 'u8[512]{0}', space=vmem, size = 0x400, scoped, tag = 'input window, operand 4, single buffered']
    #allocation11 [shape = 's32[1]{0}', space=sflag, size = 0x4, scoped, tag = 'scoped memory for tpu_custom_call.1']
    #allocation12 [shape = 'u8[512]{0}', space=vmem, size = 0x400, scoped, tag = 'input window, operand 5, single buffered']
    #allocation13 [shape = 'u8[65536]{0}', space=vmem, size = 0x10000, scoped, tag = 'input window, operand 10, single buffered']
    #allocation14 [shape = 's32[1]{0}', space=sflag, size = 0x4, scoped, tag = 'scoped memory for tpu_custom_call.1']
    #allocation15 [shape = 'u8[512]{0}', space=smem, size = 0x200, scoped, tag = 'input window, operand 12, single buffered']
    #allocation16 [shape = 'u8[16384]{0}', space=vmem, size = 0x4000, scoped, tag = 'output window, operand 0']
    %18 = vsyncpa [#allocation4], 0
    %s19 = scalar_lea.sflag [#allocation4], 1
    %20 = vsyncpa %s19, 0
    %21 = vsyncpa [#allocation8], 0
    %s22 = scalar_lea.sflag [#allocation8], 1
    %23 = vsyncpa %s22, 0
    %24 = vsyncpa [#allocation11], 0
    %25 = vsyncpa [#allocation14], 0
    %26 = vsyncpa [#allocation6], 0
    %27 = vsyncpa [#allocation5], 0
    %s28 = scalar_lea.sflag [#allocation5], 1
    %29 = vsyncpa %s28, 0
    loop: start=0, step=1, limit=4
    $region2: #{tpu_custom_call.1} parent=1 // loop_pre_header
      _
    $region3: #{tpu_custom_call.1} parent=1 // loop_header
      %s31 = sphi 0, %s35
      %p32 = scmp.ge.s32.totalorder %s31, 4
      %s38 = sphi 0, %s50
      %s39 = sphi 0, %s46
      %s40 = sphi 0, %s38
      %s41 = sphi 0, %s39
      %s42 = sphi 0, %s40
      %s43 = sphi 0, %s41
      %s55 = sphi 0, %s57
      %s58 = sphi 0, %s55
      %s59 = sphi 0, %s58
      %s75 = sphi 0, %s59
      %s83 = sphi 0, %s85
      %s86 = sphi 0, %s83
      %s87 = sphi 0, %s86
      %s103 = sphi 0, %s87
      %s107 = sphi 0, %s107
      %s109 = sphi 0, %s107
      %s110 = sphi 0, %s109
      %s124 = sphi 0, %s110
      %s128 = sphi 0, %s128
      %s130 = sphi 0, %s128
      %s131 = sphi 0, %s130
      %s145 = sphi 0, %s131
      %s149 = sphi 0, %s149
      %s151 = sphi 0, %s149
      %s152 = sphi 0, %s151
      %s166 = sphi 0, %s152
      %s170 = sphi 0, %s170
      %s172 = sphi 0, %s170
      %s173 = sphi 0, %s172
      %s187 = sphi 0, %s173
      %s191 = sphi 0, %s191
      %s193 = sphi 0, %s191
      %s194 = sphi 0, %s193
      %s208 = sphi 0, %s194
      %s212 = sphi 0, %s212
      %s214 = sphi 0, %s212
      %s215 = sphi 0, %s214
      %s229 = sphi 0, %s215
      %s233 = sphi 0, %s233
      %s235 = sphi 0, %s233
      %s236 = sphi 0, %s235
      %s250 = sphi 0, %s236
      %s254 = sphi 0, %s254
      %s256 = sphi 0, %s254
      %s257 = sphi 0, %s256
      %s271 = sphi 0, %s257
      %s275 = sphi 0, %s275
      %s277 = sphi 0, %s275
      %s278 = sphi 0, %s277
      %s292 = sphi 0, %s278
      %s296 = sphi 0, %s296
      %s298 = sphi 0, %s296
      %s299 = sphi 0, %s298
      %s313 = sphi 0, %s299
      %s317 = sphi 0, %s317
      %s319 = sphi 0, %s317
      %s320 = sphi 0, %s319
      %s334 = sphi 0, %s320
      %s342 = sphi 0, %s344
      %s345 = sphi 0, %s342
      %s346 = sphi 0, %s345
      %s362 = sphi 0, %s346
    $region4: #{tpu_custom_call.1} parent=1 // loop_header_branch
      %34 = sbr.rel (%p32) target = $region8
    $region5: #{tpu_custom_call.1} parent=1 // loop_body
      %s36 = ssub.s32 %s31, 1
      %s37 = ssub.s32 %s31, 2
      %s44 = sadd.s32 1, %s39
      %p45 = scmp.ge.s32.totalorder %s44, 1
      %s46 = scalar_select %p45, 0, %s44
      %s47 = sadd.s32 1, %s38
      %s48 = scalar_select %p45, %s47, %s38
      %p49 = scmp.ge.s32.totalorder %s48, 2
      %s50 = scalar_select %p49, 0, %s48
      %s51 = ssub.s32 %s38, %s50
      %s52 = ssub.s32 %s39, %s46
      %s53 = sor.u32 %s51, %s52
      %p54 = scmp.eq.s32.totalorder %s53, 0
      %s56 = sadd.s32 %s55, 1
      %s57 = scalar_select %p54, %s55, %s56
      %p60 = pneg %p54
      %p61 = scmp.eq.s32.totalorder %s31, 1
      %p62 = por %p60, %p61
      %p63 = scmp.ne.s32.totalorder %s55, %s58
      %p64 = scmp.eq.s32.totalorder %s31, 0
      %p65 = por %p63, %p64
      %p66 = scmp.ne.s32.totalorder %s55, %s58
      %p67 = scmp.eq.s32.totalorder %s36, 1
      %p68 = por %p66, %p67
      %p69 = scmp.ne.s32.totalorder %s58, %s59
      %p70 = scmp.eq.s32.totalorder %s36, 0
      %p71 = por %p69, %p70
      %p72 = scmp.ne.s32.totalorder %s58, %s59
      %p73 = scmp.eq.s32.totalorder %s37, 1
      %p74 = por %p72, %p73
      %p76 = scmp.ne.s32.totalorder %s59, %s75
      %p77 = scmp.eq.s32.totalorder %s37, 0
      %p78 = por %p76, %p77
      %s79 = ssub.s32 %s38, %s50
      %s80 = ssub.s32 %s39, %s46
      %s81 = sor.u32 %s79, %s80
      %p82 = scmp.eq.s32.totalorder %s81, 0
      %s84 = sadd.s32 %s83, 1
      %s85 = scalar_select %p82, %s83, %s84
      %p88 = pneg %p82
      %p89 = scmp.eq.s32.totalorder %s31, 1
      %p90 = por %p88, %p89
      %p91 = scmp.ne.s32.totalorder %s83, %s86
      %p92 = scmp.eq.s32.totalorder %s31, 0
      %p93 = por %p91, %p92
      %p94 = scmp.ne.s32.totalorder %s83, %s86
      %p95 = scmp.eq.s32.totalorder %s36, 1
      %p96 = por %p94, %p95
      %p97 = scmp.ne.s32.totalorder %s86, %s87
      %p98 = scmp.eq.s32.totalorder %s36, 0
      %p99 = por %p97, %p98
      %p100 = scmp.ne.s32.totalorder %s86, %s87
      %p101 = scmp.eq.s32.totalorder %s37, 1
      %p102 = por %p100, %p101
      %p104 = scmp.ne.s32.totalorder %s87, %s103
      %p105 = scmp.eq.s32.totalorder %s37, 0
      %p106 = por %p104, %p105
      %s108 = sadd.s32 %s107, 1
      %p111 = scmp.eq.s32.totalorder %s31, 1
      %p112 = scmp.ne.s32.totalorder %s107, %s109
      %p113 = scmp.eq.s32.totalorder %s31, 0
      %p114 = por %p112, %p113
      %p115 = scmp.ne.s32.totalorder %s107, %s109
      %p116 = scmp.eq.s32.totalorder %s36, 1
      %p117 = por %p115, %p116
      %p118 = scmp.ne.s32.totalorder %s109, %s110
      %p119 = scmp.eq.s32.totalorder %s36, 0
      %p120 = por %p118, %p119
      %p121 = scmp.ne.s32.totalorder %s109, %s110
      %p122 = scmp.eq.s32.totalorder %s37, 1
      %p123 = por %p121, %p122
      %p125 = scmp.ne.s32.totalorder %s110, %s124
      %p126 = scmp.eq.s32.totalorder %s37, 0
      %p127 = por %p125, %p126
      %s129 = sadd.s32 %s128, 1
      %p132 = scmp.eq.s32.totalorder %s31, 1
      %p133 = scmp.ne.s32.totalorder %s128, %s130
      %p134 = scmp.eq.s32.totalorder %s31, 0
      %p135 = por %p133, %p134
      %p136 = scmp.ne.s32.totalorder %s128, %s130
      %p137 = scmp.eq.s32.totalorder %s36, 1
      %p138 = por %p136, %p137
      %p139 = scmp.ne.s32.totalorder %s130, %s131
      %p140 = scmp.eq.s32.totalorder %s36, 0
      %p141 = por %p139, %p140
      %p142 = scmp.ne.s32.totalorder %s130, %s131
      %p143 = scmp.eq.s32.totalorder %s37, 1
      %p144 = por %p142, %p143
      %p146 = scmp.ne.s32.totalorder %s131, %s145
      %p147 = scmp.eq.s32.totalorder %s37, 0
      %p148 = por %p146, %p147
      %s150 = sadd.s32 %s149, 1
      %p153 = scmp.eq.s32.totalorder %s31, 1
      %p154 = scmp.ne.s32.totalorder %s149, %s151
      %p155 = scmp.eq.s32.totalorder %s31, 0
      %p156 = por %p154, %p155
      %p157 = scmp.ne.s32.totalorder %s149, %s151
      %p158 = scmp.eq.s32.totalorder %s36, 1
      %p159 = por %p157, %p158
      %p160 = scmp.ne.s32.totalorder %s151, %s152
      %p161 = scmp.eq.s32.totalorder %s36, 0
      %p162 = por %p160, %p161
      %p163 = scmp.ne.s32.totalorder %s151, %s152
      %p164 = scmp.eq.s32.totalorder %s37, 1
      %p165 = por %p163, %p164
      %p167 = scmp.ne.s32.totalorder %s152, %s166
      %p168 = scmp.eq.s32.totalorder %s37, 0
      %p169 = por %p167, %p168
      %s171 = sadd.s32 %s170, 1
      %p174 = scmp.eq.s32.totalorder %s31, 1
      %p175 = scmp.ne.s32.totalorder %s170, %s172
      %p176 = scmp.eq.s32.totalorder %s31, 0
      %p177 = por %p175, %p176
      %p178 = scmp.ne.s32.totalorder %s170, %s172
      %p179 = scmp.eq.s32.totalorder %s36, 1
      %p180 = por %p178, %p179
      %p181 = scmp.ne.s32.totalorder %s172, %s173
      %p182 = scmp.eq.s32.totalorder %s36, 0
      %p183 = por %p181, %p182
      %p184 = scmp.ne.s32.totalorder %s172, %s173
      %p185 = scmp.eq.s32.totalorder %s37, 1
      %p186 = por %p184, %p185
      %p188 = scmp.ne.s32.totalorder %s173, %s187
      %p189 = scmp.eq.s32.totalorder %s37, 0
      %p190 = por %p188, %p189
      %s192 = sadd.s32 %s191, 1
      %p195 = scmp.eq.s32.totalorder %s31, 1
      %p196 = scmp.ne.s32.totalorder %s191, %s193
      %p197 = scmp.eq.s32.totalorder %s31, 0
      %p198 = por %p196, %p197
      %p199 = scmp.ne.s32.totalorder %s191, %s193
      %p200 = scmp.eq.s32.totalorder %s36, 1
      %p201 = por %p199, %p200
      %p202 = scmp.ne.s32.totalorder %s193, %s194
      %p203 = scmp.eq.s32.totalorder %s36, 0
      %p204 = por %p202, %p203
      %p205 = scmp.ne.s32.totalorder %s193, %s194
      %p206 = scmp.eq.s32.totalorder %s37, 1
      %p207 = por %p205, %p206
      %p209 = scmp.ne.s32.totalorder %s194, %s208
      %p210 = scmp.eq.s32.totalorder %s37, 0
      %p211 = por %p209, %p210
      %s213 = sadd.s32 %s212, 1
      %p216 = scmp.eq.s32.totalorder %s31, 1
      %p217 = scmp.ne.s32.totalorder %s212, %s214
      %p218 = scmp.eq.s32.totalorder %s31, 0
      %p219 = por %p217, %p218
      %p220 = scmp.ne.s32.totalorder %s212, %s214
      %p221 = scmp.eq.s32.totalorder %s36, 1
      %p222 = por %p220, %p221
      %p223 = scmp.ne.s32.totalorder %s214, %s215
      %p224 = scmp.eq.s32.totalorder %s36, 0
      %p225 = por %p223, %p224
      %p226 = scmp.ne.s32.totalorder %s214, %s215
      %p227 = scmp.eq.s32.totalorder %s37, 1
      %p228 = por %p226, %p227
      %p230 = scmp.ne.s32.totalorder %s215, %s229
      %p231 = scmp.eq.s32.totalorder %s37, 0
      %p232 = por %p230, %p231
      %s234 = sadd.s32 %s233, 1
      %p237 = scmp.eq.s32.totalorder %s31, 1
      %p238 = scmp.ne.s32.totalorder %s233, %s235
      %p239 = scmp.eq.s32.totalorder %s31, 0
      %p240 = por %p238, %p239
      %p241 = scmp.ne.s32.totalorder %s233, %s235
      %p242 = scmp.eq.s32.totalorder %s36, 1
      %p243 = por %p241, %p242
      %p244 = scmp.ne.s32.totalorder %s235, %s236
      %p245 = scmp.eq.s32.totalorder %s36, 0
      %p246 = por %p244, %p245
      %p247 = scmp.ne.s32.totalorder %s235, %s236
      %p248 = scmp.eq.s32.totalorder %s37, 1
      %p249 = por %p247, %p248
      %p251 = scmp.ne.s32.totalorder %s236, %s250
      %p252 = scmp.eq.s32.totalorder %s37, 0
      %p253 = por %p251, %p252
      %s255 = sadd.s32 %s254, 1
      %p258 = scmp.eq.s32.totalorder %s31, 1
      %p259 = scmp.ne.s32.totalorder %s254, %s256
      %p260 = scmp.eq.s32.totalorder %s31, 0
      %p261 = por %p259, %p260
      %p262 = scmp.ne.s32.totalorder %s254, %s256
      %p263 = scmp.eq.s32.totalorder %s36, 1
      %p264 = por %p262, %p263
      %p265 = scmp.ne.s32.totalorder %s256, %s257
      %p266 = scmp.eq.s32.totalorder %s36, 0
      %p267 = por %p265, %p266
      %p268 = scmp.ne.s32.totalorder %s256, %s257
      %p269 = scmp.eq.s32.totalorder %s37, 1
      %p270 = por %p268, %p269
      %p272 = scmp.ne.s32.totalorder %s257, %s271
      %p273 = scmp.eq.s32.totalorder %s37, 0
      %p274 = por %p272, %p273
      %s276 = sadd.s32 %s275, 1
      %p279 = scmp.eq.s32.totalorder %s31, 1
      %p280 = scmp.ne.s32.totalorder %s275, %s277
      %p281 = scmp.eq.s32.totalorder %s31, 0
      %p282 = por %p280, %p281
      %p283 = scmp.ne.s32.totalorder %s275, %s277
      %p284 = scmp.eq.s32.totalorder %s36, 1
      %p285 = por %p283, %p284
      %p286 = scmp.ne.s32.totalorder %s277, %s278
      %p287 = scmp.eq.s32.totalorder %s36, 0
      %p288 = por %p286, %p287
      %p289 = scmp.ne.s32.totalorder %s277, %s278
      %p290 = scmp.eq.s32.totalorder %s37, 1
      %p291 = por %p289, %p290
      %p293 = scmp.ne.s32.totalorder %s278, %s292
      %p294 = scmp.eq.s32.totalorder %s37, 0
      %p295 = por %p293, %p294
      %s297 = sadd.s32 %s296, 1
      %p300 = scmp.eq.s32.totalorder %s31, 1
      %p301 = scmp.ne.s32.totalorder %s296, %s298
      %p302 = scmp.eq.s32.totalorder %s31, 0
      %p303 = por %p301, %p302
      %p304 = scmp.ne.s32.totalorder %s296, %s298
      %p305 = scmp.eq.s32.totalorder %s36, 1
      %p306 = por %p304, %p305
      %p307 = scmp.ne.s32.totalorder %s298, %s299
      %p308 = scmp.eq.s32.totalorder %s36, 0
      %p309 = por %p307, %p308
      %p310 = scmp.ne.s32.totalorder %s298, %s299
      %p311 = scmp.eq.s32.totalorder %s37, 1
      %p312 = por %p310, %p311
      %p314 = scmp.ne.s32.totalorder %s299, %s313
      %p315 = scmp.eq.s32.totalorder %s37, 0
      %p316 = por %p314, %p315
      %s318 = sadd.s32 %s317, 1
      %p321 = scmp.eq.s32.totalorder %s31, 1
      %p322 = scmp.ne.s32.totalorder %s317, %s319
      %p323 = scmp.eq.s32.totalorder %s31, 0
      %p324 = por %p322, %p323
      %p325 = scmp.ne.s32.totalorder %s317, %s319
      %p326 = scmp.eq.s32.totalorder %s36, 1
      %p327 = por %p325, %p326
      %p328 = scmp.ne.s32.totalorder %s319, %s320
      %p329 = scmp.eq.s32.totalorder %s36, 0
      %p330 = por %p328, %p329
      %p331 = scmp.ne.s32.totalorder %s319, %s320
      %p332 = scmp.eq.s32.totalorder %s37, 1
      %p333 = por %p331, %p332
      %p335 = scmp.ne.s32.totalorder %s320, %s334
      %p336 = scmp.eq.s32.totalorder %s37, 0
      %p337 = por %p335, %p336
      %s338 = ssub.s32 %s38, %s50
      %s339 = ssub.s32 %s39, %s46
      %s340 = sor.u32 %s338, %s339
      %p341 = scmp.eq.s32.totalorder %s340, 0
      %s343 = sadd.s32 %s342, 1
      %s344 = scalar_select %p341, %s342, %s343
      %p347 = pneg %p341
      %p348 = scmp.eq.s32.totalorder %s31, 1
      %p349 = por %p347, %p348
      %p350 = scmp.ne.s32.totalorder %s342, %s345
      %p351 = scmp.eq.s32.totalorder %s31, 0
      %p352 = por %p350, %p351
      %p353 = scmp.ne.s32.totalorder %s342, %s345
      %p354 = scmp.eq.s32.totalorder %s36, 1
      %p355 = por %p353, %p354
      %p356 = scmp.ne.s32.totalorder %s345, %s346
      %p357 = scmp.eq.s32.totalorder %s36, 0
      %p358 = por %p356, %p357
      %p359 = scmp.ne.s32.totalorder %s345, %s346
      %p360 = scmp.eq.s32.totalorder %s37, 1
      %p361 = por %p359, %p360
      %p363 = scmp.ne.s32.totalorder %s346, %s362
      %p364 = scmp.eq.s32.totalorder %s37, 0
      %p365 = por %p363, %p364
      %p366 = scmp.le.s32.totalorder 1, %s31
      %p367 = scmp.lt.s32.totalorder %s31, 3
      %p368 = pnand %p366, %p367
      %p369 = pneg %p368
      // Predicated region
      $region9: #{tpu_custom_call.1} parent=5 // pred_check
        _
      $region10: #{tpu_custom_call.1} parent=5 // pred_check_branch
        %371 = sbr.rel (%p368) target = $region12
      $region11: #{tpu_custom_call.1} parent=5 // pred_region
        %s372 = ssub.s32 %s31, 1
        // Predicated region
        $region13: #{tpu_custom_call.1} parent=11 // pred_check
          %p373 = pneg %p120
        $region14: #{tpu_custom_call.1} parent=11 // pred_check_branch
          %375 = sbr.rel (%p373) target = $region16
        $region15: #{tpu_custom_call.1} parent=11 // pred_region
          %377 = vsyncadd [#allocation8], 0
          %s378 = sshll.u32 %s2, 4
          %s379 = int_to_ptr.hbm [resolvable:$true] %s378
          %s380 = sshll.u32 [#allocation9], 4
          %s381 = int_to_ptr.vmem [resolvable:$true] %s380
          %386 = dma.hbm_to_vmem [thread:$0]  %s379, 2048, %s381, [#allocation8], 128, 128, 8
        $region16: #{tpu_custom_call.1} parent=11 // pred_fallthru
          _
        // Predicated region
        $region17: #{tpu_custom_call.1} parent=11 // pred_check
          %p387 = pneg %p141
        $region18: #{tpu_custom_call.1} parent=11 // pred_check_branch
          %389 = sbr.rel (%p387) target = $region20
        $region19: #{tpu_custom_call.1} parent=11 // pred_region
          _
        $region20: #{tpu_custom_call.1} parent=11 // pred_fallthru
          _
        // Predicated region
        $region21: #{tpu_custom_call.1} parent=11 // pred_check
          %p390 = pneg %p162
        $region22: #{tpu_custom_call.1} parent=11 // pred_check_branch
          %392 = sbr.rel (%p390) target = $region24
        $region23: #{tpu_custom_call.1} parent=11 // pred_region
          %394 = vsyncadd [#allocation11], 0
          %s396 = sshll.u32 %s4, 4
          %s397 = int_to_ptr.hbm [resolvable:$true] %s396
          %s398 = sshll.u32 [#allocation10], 4
          %s399 = int_to_ptr.vmem [resolvable:$true] %s398
          %401 = dma.hbm_to_vmem [thread:$0]  %s397, 16, %s399, [#allocation11]
        $region24: #{tpu_custom_call.1} parent=11 // pred_fallthru
          _
        // Predicated region
        $region25: #{tpu_custom_call.1} parent=11 // pred_check
          %p402 = pneg %p183
        $region26: #{tpu_custom_call.1} parent=11 // pred_check_branch
          %404 = sbr.rel (%p402) target = $region28
        $region27: #{tpu_custom_call.1} parent=11 // pred_region
          %406 = vsyncadd [#allocation11], 0
          %s408 = sshll.u32 %s5, 4
          %s409 = int_to_ptr.hbm [resolvable:$true] %s408
          %s410 = sshll.u32 [#allocation12], 4
          %s411 = int_to_ptr.vmem [resolvable:$true] %s410
          %413 = dma.hbm_to_vmem [thread:$0]  %s409, 16, %s411, [#allocation11]
        $region28: #{tpu_custom_call.1} parent=11 // pred_fallthru
          _
        // Predicated region
        $region29: #{tpu_custom_call.1} parent=11 // pred_check
          %p414 = pneg %p204
        $region30: #{tpu_custom_call.1} parent=11 // pred_check_branch
          %416 = sbr.rel (%p414) target = $region32
        $region31: #{tpu_custom_call.1} parent=11 // pred_region
          _
        $region32: #{tpu_custom_call.1} parent=11 // pred_fallthru
          _
        // Predicated region
        $region33: #{tpu_custom_call.1} parent=11 // pred_check
          %p417 = pneg %p225
        $region34: #{tpu_custom_call.1} parent=11 // pred_check_branch
          %419 = sbr.rel (%p417) target = $region36
        $region35: #{tpu_custom_call.1} parent=11 // pred_region
          _
        $region36: #{tpu_custom_call.1} parent=11 // pred_fallthru
          _
        // Predicated region
        $region37: #{tpu_custom_call.1} parent=11 // pred_check
          %p420 = pneg %p246
        $region38: #{tpu_custom_call.1} parent=11 // pred_check_branch
          %422 = sbr.rel (%p420) target = $region40
        $region39: #{tpu_custom_call.1} parent=11 // pred_region
          _
        $region40: #{tpu_custom_call.1} parent=11 // pred_fallthru
          _
        // Predicated region
        $region41: #{tpu_custom_call.1} parent=11 // pred_check
          %p423 = pneg %p267
        $region42: #{tpu_custom_call.1} parent=11 // pred_check_branch
          %425 = sbr.rel (%p423) target = $region44
        $region43: #{tpu_custom_call.1} parent=11 // pred_region
          _
        $region44: #{tpu_custom_call.1} parent=11 // pred_fallthru
          _
        // Predicated region
        $region45: #{tpu_custom_call.1} parent=11 // pred_check
          %p426 = pneg %p288
        $region46: #{tpu_custom_call.1} parent=11 // pred_check_branch
          %428 = sbr.rel (%p426) target = $region48
        $region47: #{tpu_custom_call.1} parent=11 // pred_region
          %430 = vsyncadd [#allocation14], 0
          %s431 = sshll.u32 %s10, 4
          %s432 = int_to_ptr.hbm [resolvable:$true] %s431
          %s433 = sshll.u32 [#allocation13], 4
          %s434 = int_to_ptr.vmem [resolvable:$true] %s433
          %439 = dma.hbm_to_vmem [thread:$0]  %s432, 2048, %s434, [#allocation14], 128, 128, 8
        $region48: #{tpu_custom_call.1} parent=11 // pred_fallthru
          _
        // Predicated region
        $region49: #{tpu_custom_call.1} parent=11 // pred_check
          %p440 = pneg %p309
        $region50: #{tpu_custom_call.1} parent=11 // pred_check_branch
          %442 = sbr.rel (%p440) target = $region52
        $region51: #{tpu_custom_call.1} parent=11 // pred_region
          _
        $region52: #{tpu_custom_call.1} parent=11 // pred_fallthru
          _
        // Predicated region
        $region53: #{tpu_custom_call.1} parent=11 // pred_check
          %p443 = pneg %p330
        $region54: #{tpu_custom_call.1} parent=11 // pred_check_branch
          %445 = sbr.rel (%p443) target = $region56
        $region55: #{tpu_custom_call.1} parent=11 // pred_region
          %447 = vsyncadd [#allocation6], 0
          %s449 = sshll.u32 %s12, 4
          %s450 = int_to_ptr.vmem [resolvable:$true] %s449
          %452 = dma.vmem_to_smem %s450, 16, [#allocation15], [#allocation6]
        $region56: #{tpu_custom_call.1} parent=11 // pred_fallthru
          _
      $region12: #{tpu_custom_call.1} parent=5 // pred_fallthru
        _
      %p453 = scmp.lt.s32.totalorder %s31, 2
      // Predicated region
      $region57: #{tpu_custom_call.1} parent=5 // pred_check
        %p454 = pneg %p453
      $region58: #{tpu_custom_call.1} parent=5 // pred_check_branch
        %456 = sbr.rel (%p454) target = $region60
      $region59: #{tpu_custom_call.1} parent=5 // pred_region
        // Predicated region
        $region61: #{tpu_custom_call.1} parent=59 // pred_check
          %p457 = pneg %p65
        $region62: #{tpu_custom_call.1} parent=59 // pred_check_branch
          %459 = sbr.rel (%p457) target = $region64
        $region63: #{tpu_custom_call.1} parent=59 // pred_region
          %s460 = sand.u32 %s55, 1
          %s461 = scalar_lea.sflag [#allocation4], %s460
          %s462 = sand.u32 %s55, 1
          %s463 = smul.addr %s462, 16
          %s464 = scalar_lea.vmem [#allocation3], %s463
          %s465 = smul.u32 2, %s39
          %467 = vsyncadd %s461, 0
          %s468 = smul.addr %s38, 2
          %s469 = sadd.s32 %s465, %s468
          %s470 = smul.addr %s469, 8
          %s471 = scalar_lea.hbm %s0, %s470
          %s472 = sshll.u32 %s471, 4
          %s473 = int_to_ptr.hbm [resolvable:$true] %s472
          %s474 = sshll.u32 %s464, 4
          %s475 = int_to_ptr.vmem [resolvable:$true] %s474
          %480 = dma.hbm_to_vmem [thread:$0]  %s473, 256, %s475, %s461, 128, 128, 8
        $region64: #{tpu_custom_call.1} parent=59 // pred_fallthru
          _
        // Predicated region
        $region65: #{tpu_custom_call.1} parent=59 // pred_check
          %p481 = pneg %p93
        $region66: #{tpu_custom_call.1} parent=59 // pred_check_branch
          %483 = sbr.rel (%p481) target = $region68
        $region67: #{tpu_custom_call.1} parent=59 // pred_region
          %s484 = sand.u32 %s31, 1
          %s485 = scalar_lea.sflag [#allocation8], %s484
          %s486 = sand.u32 %s83, 1
          %s487 = smul.addr %s486, 8
          %s488 = scalar_lea.vmem [#allocation7], %s487
          %490 = vsyncadd %s485, 0
          %s491 = sadd.s32 %s39, %s38
          %s492 = smul.addr %s491, 8
          %s493 = scalar_lea.hbm %s1, %s492
          %s495 = sshll.u32 %s493, 4
          %s496 = int_to_ptr.hbm [resolvable:$true] %s495
          %s497 = sshll.u32 %s488, 4
          %s498 = int_to_ptr.vmem [resolvable:$true] %s497
          %500 = dma.hbm_to_vmem [thread:$0]  %s496, 128, %s498, %s485
        $region68: #{tpu_custom_call.1} parent=59 // pred_fallthru
          _
      $region60: #{tpu_custom_call.1} parent=5 // pred_fallthru
        _
      %p501 = scmp.le.s32.totalorder 1, %s31
      %p502 = scmp.lt.s32.totalorder %s31, 3
      %p503 = pnand %p501, %p502
      %p504 = pneg %p503
      // Predicated region
      $region69: #{tpu_custom_call.1} parent=5 // pred_check
        _
      $region70: #{tpu_custom_call.1} parent=5 // pred_check_branch
        %506 = sbr.rel (%p503) target = $region72
      $region71: #{tpu_custom_call.1} parent=5 // pred_region
        %s507 = ssub.s32 %s31, 1
        %s508 = sand.u32 %s58, 1
        %s509 = scalar_lea.sflag [#allocation4], %s508
        %s510 = sand.u32 %s58, 1
        %s511 = smul.addr %s510, 16
        %s512 = scalar_lea.vmem [#allocation3], %s511
        // Predicated region
        $region73: #{tpu_custom_call.1} parent=71 // pred_check
          %p513 = pneg %p71
        $region74: #{tpu_custom_call.1} parent=71 // pred_check_branch
          %515 = sbr.rel (%p513) target = $region76
        $region75: #{tpu_custom_call.1} parent=71 // pred_region
          %517 = dma.done %s509, 256
        $region76: #{tpu_custom_call.1} parent=71 // pred_fallthru
          _
        %s518 = sand.u32 %s36, 1
        %s519 = scalar_lea.sflag [#allocation8], %s518
        %s520 = sand.u32 %s86, 1
        %s521 = smul.addr %s520, 8
        %s522 = scalar_lea.vmem [#allocation7], %s521
        // Predicated region
        $region77: #{tpu_custom_call.1} parent=71 // pred_check
          %p523 = pneg %p99
        $region78: #{tpu_custom_call.1} parent=71 // pred_check_branch
          %525 = sbr.rel (%p523) target = $region80
        $region79: #{tpu_custom_call.1} parent=71 // pred_region
          %527 = dma.done %s519, 128
        $region80: #{tpu_custom_call.1} parent=71 // pred_fallthru
          _
        // Predicated region
        $region81: #{tpu_custom_call.1} parent=71 // pred_check
          %p528 = pneg %p120
        $region82: #{tpu_custom_call.1} parent=71 // pred_check_branch
          %530 = sbr.rel (%p528) target = $region84
        $region83: #{tpu_custom_call.1} parent=71 // pred_region
          %532 = dma.done [#allocation8], 2048
        $region84: #{tpu_custom_call.1} parent=71 // pred_fallthru
          _
        // Predicated region
        $region85: #{tpu_custom_call.1} parent=71 // pred_check
          %p533 = pneg %p162
        $region86: #{tpu_custom_call.1} parent=71 // pred_check_branch
          %535 = sbr.rel (%p533) target = $region88
        $region87: #{tpu_custom_call.1} parent=71 // pred_region
          %537 = dma.done [#allocation11], 16
        $region88: #{tpu_custom_call.1} parent=71 // pred_fallthru
          _
        // Predicated region
        $region89: #{tpu_custom_call.1} parent=71 // pred_check
          %p538 = pneg %p183
        $region90: #{tpu_custom_call.1} parent=71 // pred_check_branch
          %540 = sbr.rel (%p538) target = $region92
        $region91: #{tpu_custom_call.1} parent=71 // pred_region
          %542 = dma.done [#allocation11], 16
        $region92: #{tpu_custom_call.1} parent=71 // pred_fallthru
          _
        // Predicated region
        $region93: #{tpu_custom_call.1} parent=71 // pred_check
          %p543 = pneg %p288
        $region94: #{tpu_custom_call.1} parent=71 // pred_check_branch
          %545 = sbr.rel (%p543) target = $region96
        $region95: #{tpu_custom_call.1} parent=71 // pred_region
          %547 = dma.done [#allocation14], 2048
        $region96: #{tpu_custom_call.1} parent=71 // pred_fallthru
          _
        // Predicated region
        $region97: #{tpu_custom_call.1} parent=71 // pred_check
          %p548 = pneg %p330
        $region98: #{tpu_custom_call.1} parent=71 // pred_check_branch
          %550 = sbr.rel (%p548) target = $region100
        $region99: #{tpu_custom_call.1} parent=71 // pred_region
          %552 = dma.done [#allocation6], 16
        $region100: #{tpu_custom_call.1} parent=71 // pred_fallthru
          _
        %553 = sfence
        %s554 = sand.u32 %s58, 1
        %s555 = scalar_lea.sflag [#allocation4], %s554
        %s556 = sand.u32 %s58, 1
        %s557 = smul.addr %s556, 16
        %s558 = scalar_lea.vmem [#allocation3], %s557
        %p559 = pneg %p71
        %p560 = pneg %p68
        %s561 = sand.u32 %s36, 1
        %s562 = scalar_lea.sflag [#allocation8], %s561
        %s563 = sand.u32 %s86, 1
        %s564 = smul.addr %s563, 8
        %s565 = scalar_lea.vmem [#allocation7], %s564
        %p566 = pneg %p99
        %p567 = pneg %p96
        %p568 = pneg %p120
        %p569 = pneg %p117
        %p570 = pneg %p141
        %p571 = pneg %p138
        %p572 = pneg %p162
        %p573 = pneg %p159
        %p574 = pneg %p183
        %p575 = pneg %p180
        %p576 = pneg %p204
        %p577 = pneg %p201
        %p578 = pneg %p225
        %p579 = pneg %p222
        %p580 = pneg %p246
        %p581 = pneg %p243
        %p582 = pneg %p267
        %p583 = pneg %p264
        %p584 = pneg %p288
        %p585 = pneg %p285
        %p586 = pneg %p309
        %p587 = pneg %p306
        %p588 = pneg %p330
        %p589 = pneg %p327
        %p590 = pneg %p358
        %p591 = pneg %p355
        %s592 = sand.u32 %s345, 1
        %s593 = scalar_lea.sflag [#allocation5], %s592
        %s594 = sand.u32 %s345, 1
        %s595 = smul.addr %s594, 16
        %s596 = scalar_lea.vmem [#allocation16], %s595
        %s597 = smul.u32 2, %s41
        %s598 = smul.u32 2, %s41
        %s599 = smul.u32 %s41, 16
        %s600 = sld [smem:[#allocation15]]
        %s601 = sld [smem:[#allocation15 + $0x1]]
        %v602 = vld [vmem:[%s512] sm:$0xff]
        %v603 = vld [vmem:[%s512 + $0x8] sm:$0xff]
        %v604 = vld [vmem:[#allocation9] sm:$0xff]
        %v605 = vld [vmem:[#allocation9 + $0x8] sm:$0xff]
        %v606 = vld [vmem:[#allocation9 + $0x10] sm:$0xff]
        %v607 = vld [vmem:[#allocation9 + $0x18] sm:$0xff]
        %v608 = vld [vmem:[#allocation9 + $0x20] sm:$0xff]
        %v609 = vld [vmem:[#allocation9 + $0x28] sm:$0xff]
        %v610 = vld [vmem:[#allocation9 + $0x30] sm:$0xff]
        %v611 = vld [vmem:[#allocation9 + $0x38] sm:$0xff]
        %v612 = vld [vmem:[#allocation9 + $0x40] sm:$0xff]
        %v613 = vld [vmem:[#allocation9 + $0x48] sm:$0xff]
        %v614 = vld [vmem:[#allocation9 + $0x50] sm:$0xff]
        %v615 = vld [vmem:[#allocation9 + $0x58] sm:$0xff]
        %v616 = vld [vmem:[#allocation9 + $0x60] sm:$0xff]
        %v617 = vld [vmem:[#allocation9 + $0x68] sm:$0xff]
        %v618 = vld [vmem:[#allocation9 + $0x70] sm:$0xff]
        %v619 = vld [vmem:[#allocation9 + $0x78] sm:$0xff]
        %v620 = vld [vmem:[%s3] sm:$0x1]
        %v622 = vperm.slane %v620, 0
        %624 = vmatpush.msra.mxu0 %v619
        %625 = vmatpush.msra.mxu0 %v618
        %626 = vmatpush.msra.mxu0 %v617
        %627 = vmatpush.msra.mxu0 %v616
        %628 = vmatpush.msra.mxu0 %v615
        %629 = vmatpush.msra.mxu0 %v614
        %630 = vmatpush.msra.mxu0 %v613
        %631 = vmatpush.msra.mxu0 %v612
        %632 = vmatpush.msra.mxu0 %v611
        %633 = vmatpush.msra.mxu0 %v610
        %634 = vmatpush.msra.mxu0 %v609
        %635 = vmatpush.msra.mxu0 %v608
        %636 = vmatpush.msra.mxu0 %v607
        %637 = vmatpush.msra.mxu0 %v606
        %638 = vmatpush.msra.mxu0 %v605
        %639 = vmatpush.msra.mxu0 %v604
        %640 = vmatmul.f32.gmra.mxu0 %v602
        %v641 = vpop.f32.mrf.mxu0
        %v642 = vadd.f32 %v622, %v641
        %643 = vmatmul.f32.gmra.mxu0 %v603
        %v644 = vpop.f32.mrf.mxu0
        %v645 = vadd.f32 %v622, %v644
        %646 = vdwg.mxu0
        %vm647 = vcmp.ge.f32.partialorder %v642, 0.0
        %vm648 = vcmp.ge.f32.partialorder %v645, 0.0
        %v649 = vstv %s600
        %v650 = vmul.f32 %v649, %v642
        %v651 = vmul.f32 %v649, %v645
        %v652 = vsel %vm647, %v642, %v650
        %v653 = vsel %vm648, %v645, %v651
        %v654 = vld [vmem:[#allocation10] sm:$0x1]
        %v655 = vld [vmem:[#allocation12] sm:$0x1]
        %656 = vadd.xlane.f32.xlu0 %v652
        %v657 = vpop.xlane.xlu0 %656
        %658 = vadd.xlane.f32.xlu0 %v653
        %v659 = vpop.xlane.xlu0 %658
        %v660 = vmul.f32 %v657, 0.0078125
        %v661 = vmul.f32 %v659, 0.0078125
        %v662 = vmul.f32 %v652, %v652
        %v663 = vmul.f32 %v653, %v653
        %664 = vadd.xlane.f32.xlu0 %v662
        %v665 = vpop.xlane.xlu0 %664
        %666 = vadd.xlane.f32.xlu0 %v663
        %v667 = vpop.xlane.xlu0 %666
        %v668 = vmul.f32 %v665, 0.0078125
        %v669 = vmul.f32 %v667, 0.0078125
        %v670 = vmul.f32 %v660, %v660
        %v671 = vmul.f32 %v661, %v661
        %v672 = vsub.f32 %v668, %v670
        %v673 = vsub.f32 %v669, %v671
        %v674 = vsub.f32 %v652, %v660
        %v675 = vsub.f32 %v653, %v661
        %v676 = vadd.f32 %v672, 1e-05
        %v677 = vadd.f32 %v673, 1e-05
        %v678 = vrsqrt.pop %v676
        %v679 = vmul.f32 %v678, %v676
        %v680 = vmul.f32 %v679, %v678
        %v681 = vmul.f32 0.5, %v680
        %v682 = vsub.f32 1.5, %v681
        %v683 = vmul.f32 %v678, %v682
        %vm684 = vweird.f32 %v676
        %vm685 = vweird.f32 %v678
        %vm686 = vmor %vm684, %vm685
        %v687 = vsel %vm686, %v678, %v683
        %v688 = vrsqrt.pop %v677
        %v689 = vmul.f32 %v688, %v677
        %v690 = vmul.f32 %v689, %v688
        %v691 = vmul.f32 0.5, %v690
        %v692 = vsub.f32 1.5, %v691
        %v693 = vmul.f32 %v688, %v692
        %vm694 = vweird.f32 %v677
        %vm695 = vweird.f32 %v688
        %vm696 = vmor %vm694, %vm695
        %v697 = vsel %vm696, %v688, %v693
        %v698 = vmul.f32 %v674, %v687
        %v699 = vmul.f32 %v675, %v697
        %v701 = vperm.slane %v654, 0
        %v703 = vmul.f32 %v698, %v701
        %v704 = vmul.f32 %v699, %v701
        %v706 = vperm.slane %v655, 0
        %v708 = vadd.f32 %v703, %v706
        %v709 = vadd.f32 %v704, %v706
        %v710 = vlaneseq
        %v711 = vshrl.u32 %v710, 7
        %v712 = vadd.s32 %v711, 8
        %v713 = vstv %s599
        %v714 = vadd.s32 %v713, %v711
        %v715 = vadd.s32 %v713, %v712
        %vm716 = vcmp.lt.s32.totalorder %v714, 16
        %vm717 = vcmp.lt.s32.totalorder %v715, 16
        %v718 = vsel %vm716, 1, 0
        %v719 = vsel %vm717, 1, 0
        %vm720 = vcmp.eq.s32.totalorder %v718, 1
        %vm721 = vcmp.eq.s32.totalorder %v719, 1
        %v722 = vsel %vm720, %v708, 0.0
        %v723 = vsel %vm721, %v709, 0.0
        %724 = vst [vmem:[#allocation2 + $0x8] sm:$0xff] %v722
        %725 = vst [vmem:[#allocation2 + $0x10] sm:$0xff] %v723
        %v726 = vld [vmem:[%s522] sm:$0xff]
        %v727 = vld [vmem:[#allocation9] sm:$0xff]
        %v728 = vld [vmem:[#allocation9 + $0x8] sm:$0xff]
        %v729 = vld [vmem:[#allocation9 + $0x10] sm:$0xff]
        %v730 = vld [vmem:[#allocation9 + $0x18] sm:$0xff]
        %v731 = vld [vmem:[#allocation9 + $0x20] sm:$0xff]
        %v732 = vld [vmem:[#allocation9 + $0x28] sm:$0xff]
        %v733 = vld [vmem:[#allocation9 + $0x30] sm:$0xff]
        %v734 = vld [vmem:[#allocation9 + $0x38] sm:$0xff]
        %v735 = vld [vmem:[#allocation9 + $0x40] sm:$0xff]
        %v736 = vld [vmem:[#allocation9 + $0x48] sm:$0xff]
        %v737 = vld [vmem:[#allocation9 + $0x50] sm:$0xff]
        %v738 = vld [vmem:[#allocation9 + $0x58] sm:$0xff]
        %v739 = vld [vmem:[#allocation9 + $0x60] sm:$0xff]
        %v740 = vld [vmem:[#allocation9 + $0x68] sm:$0xff]
        %v741 = vld [vmem:[#allocation9 + $0x70] sm:$0xff]
        %v742 = vld [vmem:[#allocation9 + $0x78] sm:$0xff]
        %v743 = vld [vmem:[%s3] sm:$0x1]
        %v745 = vperm.slane %v743, 0
        %747 = vmatpush.msra.mxu0 %v742
        %748 = vmatpush.msra.mxu0 %v741
        %749 = vmatpush.msra.mxu0 %v740
        %750 = vmatpush.msra.mxu0 %v739
        %751 = vmatpush.msra.mxu0 %v738
        %752 = vmatpush.msra.mxu0 %v737
        %753 = vmatpush.msra.mxu0 %v736
        %754 = vmatpush.msra.mxu0 %v735
        %755 = vmatpush.msra.mxu0 %v734
        %756 = vmatpush.msra.mxu0 %v733
        %757 = vmatpush.msra.mxu0 %v732
        %758 = vmatpush.msra.mxu0 %v731
        %759 = vmatpush.msra.mxu0 %v730
        %760 = vmatpush.msra.mxu0 %v729
        %761 = vmatpush.msra.mxu0 %v728
        %762 = vmatpush.msra.mxu0 %v727
        %763 = vmatmul.f32.gmra.mxu0 %v726
        %v764 = vpop.f32.mrf.mxu0
        %v765 = vadd.f32 %v745, %v764
        %766 = vdwg.mxu0
        %vm767 = vcmp.ge.f32.partialorder %v765, 0.0
        %v768 = vmul.f32 %v649, %v765
        %v769 = vsel %vm767, %v765, %v768
        %v770 = vld [vmem:[#allocation10] sm:$0x1]
        %v771 = vld [vmem:[#allocation12] sm:$0x1]
        %772 = vadd.xlane.f32.xlu0 %v769
        %v773 = vpop.xlane.xlu0 %772
        %v774 = vmul.f32 %v773, 0.0078125
        %v775 = vmul.f32 %v769, %v769
        %776 = vadd.xlane.f32.xlu0 %v775
        %v777 = vpop.xlane.xlu0 %776
        %v778 = vmul.f32 %v777, 0.0078125
        %v779 = vmul.f32 %v774, %v774
        %v780 = vsub.f32 %v778, %v779
        %v781 = vsub.f32 %v769, %v774
        %v782 = vadd.f32 %v780, 1e-05
        %v783 = vrsqrt.pop %v782
        %v784 = vmul.f32 %v783, %v782
        %v785 = vmul.f32 %v784, %v783
        %v786 = vmul.f32 0.5, %v785
        %v787 = vsub.f32 1.5, %v786
        %v788 = vmul.f32 %v783, %v787
        %vm789 = vweird.f32 %v782
        %vm790 = vweird.f32 %v783
        %vm791 = vmor %vm789, %vm790
        %v792 = vsel %vm791, %v783, %v788
        %v793 = vmul.f32 %v781, %v792
        %v795 = vperm.slane %v770, 0
        %v797 = vmul.f32 %v793, %v795
        %v799 = vperm.slane %v771, 0
        %v801 = vadd.f32 %v797, %v799
        %vm802 = vcmp.lt.s32.totalorder %v711, 1
        %s803 = ssub.s32 %s599, 1
        %v804 = vstv %s803
        %v805 = vadd.s32 %v804, %v711
        %s806 = sadd.s32 %s599, 16
        %v807 = vsub.s32 %v711, 1
        %v808 = vstv %s806
        %v809 = vadd.s32 %v808, %v807
        %v810 = vsel %vm802, %v805, %v809
        %vm811 = vcmp.lt.s32.totalorder %v711, 2
        %vm812 = vcmp.ge.s32.totalorder %v810, 0
        %vm813 = vmand %vm811, %vm812
        %vm814 = vcmp.lt.s32.totalorder %v810, 16
        %vm815 = vmand %vm813, %vm814
        %v816 = vsel %vm815, 1, 0
        %vm817 = vcmp.eq.s32.totalorder %v816, 1
        %v818 = vsel %vm817, %v801, 0.0
        %819 = vst [vmem:[#allocation2 + $0x7] sm:$0x1] %v818
        %820 = vst [vmem:[#allocation2 + $0x17] sm:$0x2] %v818
        %v821 = vld [vmem:[#allocation2 + $0x7] sm:$0xff]
        %v822 = vld [vmem:[#allocation2 + $0xf] sm:$0xff]
        %v823 = vld [vmem:[%s6] sm:$0x1]
        %v824 = vperm.slane %v823, 0
        %v825 = vmul.f32 %v821, %v824
        %v826 = vmul.f32 %v822, %v824
        %v827 = vld [vmem:[%s7] sm:$0x1]
        %v829 = vperm.slane %v827, 0
        %v831 = vadd.f32 %v825, %v829
        %v832 = vadd.f32 %v826, %v829
        %v833 = vld [vmem:[#allocation2 + $0x8] sm:$0xff]
        %v834 = vld [vmem:[#allocation2 + $0x10] sm:$0xff]
        %v835 = vld [vmem:[%s6 + $0x1] sm:$0x1]
        %v836 = vperm.slane %v835, 0
        %v837 = vmul.f32 %v833, %v836
        %v838 = vmul.f32 %v834, %v836
        %v839 = vadd.f32 %v831, %v837
        %v840 = vadd.f32 %v832, %v838
        %v841 = vld [vmem:[#allocation2 + $0x9] sm:$0xff]
        %v842 = vld [vmem:[#allocation2 + $0x11] sm:$0xff]
        %v843 = vld [vmem:[%s6 + $0x2] sm:$0x1]
        %v844 = vperm.slane %v843, 0
        %v845 = vmul.f32 %v841, %v844
        %v846 = vmul.f32 %v842, %v844
        %v847 = vadd.f32 %v839, %v845
        %v848 = vadd.f32 %v840, %v846
        %vm849 = vcmp.ge.f32.partialorder %v847, 0.0
        %vm850 = vcmp.ge.f32.partialorder %v848, 0.0
        %v851 = vstv %s601
        %v852 = vmul.f32 %v851, %v847
        %v853 = vmul.f32 %v851, %v848
        %v854 = vsel %vm849, %v847, %v852
        %v855 = vsel %vm850, %v848, %v853
        %v856 = vld [vmem:[%s8] sm:$0x1]
        %v857 = vld [vmem:[%s9] sm:$0x1]
        %858 = vadd.xlane.f32.xlu0 %v854
        %v859 = vpop.xlane.xlu0 %858
        %860 = vadd.xlane.f32.xlu0 %v855
        %v861 = vpop.xlane.xlu0 %860
        %v862 = vmul.f32 %v859, 0.0078125
        %v863 = vmul.f32 %v861, 0.0078125
        %v864 = vmul.f32 %v854, %v854
        %v865 = vmul.f32 %v855, %v855
        %866 = vadd.xlane.f32.xlu0 %v864
        %v867 = vpop.xlane.xlu0 %866
        %868 = vadd.xlane.f32.xlu0 %v865
        %v869 = vpop.xlane.xlu0 %868
        %v870 = vmul.f32 %v867, 0.0078125
        %v871 = vmul.f32 %v869, 0.0078125
        %v872 = vmul.f32 %v862, %v862
        %v873 = vmul.f32 %v863, %v863
        %v874 = vsub.f32 %v870, %v872
        %v875 = vsub.f32 %v871, %v873
        %v876 = vsub.f32 %v854, %v862
        %v877 = vsub.f32 %v855, %v863
        %v878 = vadd.f32 %v874, 1e-05
        %v879 = vadd.f32 %v875, 1e-05
        %v880 = vrsqrt.pop %v878
        %v881 = vmul.f32 %v880, %v878
        %v882 = vmul.f32 %v881, %v880
        %v883 = vmul.f32 0.5, %v882
        %v884 = vsub.f32 1.5, %v883
        %v885 = vmul.f32 %v880, %v884
        %vm886 = vweird.f32 %v878
        %vm887 = vweird.f32 %v880
        %vm888 = vmor %vm886, %vm887
        %v889 = vsel %vm888, %v880, %v885
        %v890 = vrsqrt.pop %v879
        %v891 = vmul.f32 %v890, %v879
        %v892 = vmul.f32 %v891, %v890
        %v893 = vmul.f32 0.5, %v892
        %v894 = vsub.f32 1.5, %v893
        %v895 = vmul.f32 %v890, %v894
        %vm896 = vweird.f32 %v879
        %vm897 = vweird.f32 %v890
        %vm898 = vmor %vm896, %vm897
        %v899 = vsel %vm898, %v890, %v895
        %v900 = vmul.f32 %v876, %v889
        %v901 = vmul.f32 %v877, %v899
        %v903 = vperm.slane %v856, 0
        %v905 = vmul.f32 %v900, %v903
        %v906 = vmul.f32 %v901, %v903
        %v908 = vperm.slane %v857, 0
        %v910 = vadd.f32 %v905, %v908
        %v911 = vadd.f32 %v906, %v908
        %v912 = vld [vmem:[#allocation13] sm:$0xff]
        %v913 = vld [vmem:[#allocation13 + $0x8] sm:$0xff]
        %v914 = vld [vmem:[#allocation13 + $0x10] sm:$0xff]
        %v915 = vld [vmem:[#allocation13 + $0x18] sm:$0xff]
        %v916 = vld [vmem:[#allocation13 + $0x20] sm:$0xff]
        %v917 = vld [vmem:[#allocation13 + $0x28] sm:$0xff]
        %v918 = vld [vmem:[#allocation13 + $0x30] sm:$0xff]
        %v919 = vld [vmem:[#allocation13 + $0x38] sm:$0xff]
        %v920 = vld [vmem:[#allocation13 + $0x40] sm:$0xff]
        %v921 = vld [vmem:[#allocation13 + $0x48] sm:$0xff]
        %v922 = vld [vmem:[#allocation13 + $0x50] sm:$0xff]
        %v923 = vld [vmem:[#allocation13 + $0x58] sm:$0xff]
        %v924 = vld [vmem:[#allocation13 + $0x60] sm:$0xff]
        %v925 = vld [vmem:[#allocation13 + $0x68] sm:$0xff]
        %v926 = vld [vmem:[#allocation13 + $0x70] sm:$0xff]
        %v927 = vld [vmem:[#allocation13 + $0x78] sm:$0xff]
        %v928 = vld [vmem:[%s11] sm:$0x1]
        %v930 = vperm.slane %v928, 0
        %932 = vmatpush.msra.mxu0 %v927
        %933 = vmatpush.msra.mxu0 %v926
        %934 = vmatpush.msra.mxu0 %v925
        %935 = vmatpush.msra.mxu0 %v924
        %936 = vmatpush.msra.mxu0 %v923
        %937 = vmatpush.msra.mxu0 %v922
        %938 = vmatpush.msra.mxu0 %v921
        %939 = vmatpush.msra.mxu0 %v920
        %940 = vmatpush.msra.mxu0 %v919
        %941 = vmatpush.msra.mxu0 %v918
        %942 = vmatpush.msra.mxu0 %v917
        %943 = vmatpush.msra.mxu0 %v916
        %944 = vmatpush.msra.mxu0 %v915
        %945 = vmatpush.msra.mxu0 %v914
        %946 = vmatpush.msra.mxu0 %v913
        %947 = vmatpush.msra.mxu0 %v912
        %948 = vmatmul.f32.gmra.mxu0 %v910
        %v949 = vpop.f32.mrf.mxu0
        %v950 = vadd.f32 %v930, %v949
        %951 = vmatmul.f32.gmra.mxu0 %v911
        %v952 = vpop.f32.mrf.mxu0
        %v953 = vadd.f32 %v930, %v952
        %954 = vdwg.mxu0
        %v955 = vld [vmem:[%s512] sm:$0xff]
        %v956 = vld [vmem:[%s512 + $0x8] sm:$0xff]
        %v957 = vadd.f32 %v955, %v950
        %v958 = vadd.f32 %v956, %v953
        %959 = vst [vmem:[%s596] sm:$0xff] %v957
        %960 = vst [vmem:[%s596 + $0x8] sm:$0xff] %v958
        %s961 = sand.u32 %s345, 1
        %s962 = scalar_lea.sflag [#allocation5], %s961
        %s963 = sand.u32 %s345, 1
        %s964 = smul.addr %s963, 16
        %s965 = scalar_lea.vmem [#allocation16], %s964
        // Predicated region
        $region101: #{tpu_custom_call.1} parent=71 // pred_check
          %p966 = pneg %p355
        $region102: #{tpu_custom_call.1} parent=71 // pred_check_branch
          %968 = sbr.rel (%p966) target = $region104
        $region103: #{tpu_custom_call.1} parent=71 // pred_region
          %s969 = smul.u32 2, %s41
          %971 = vsyncadd %s962, 0
          %s972 = smul.addr %s40, 2
          %s973 = sadd.s32 %s969, %s972
          %s974 = smul.addr %s973, 8
          %s975 = scalar_lea.hbm %s13, %s974
          %s976 = sshll.u32 %s965, 4
          %s977 = int_to_ptr.vmem [resolvable:$true] %s976
          %s978 = sshll.u32 %s975, 4
          %s979 = int_to_ptr.hbm [resolvable:$true] %s978
          %984 = dma.vmem_to_hbm [thread:$0]  %s977, 256, %s979, %s962, 128, 128, 8
        $region104: #{tpu_custom_call.1} parent=71 // pred_fallthru
          _
      $region72: #{tpu_custom_call.1} parent=5 // pred_fallthru
        _
      %p985 = scmp.le.s32.totalorder 2, %s31
      // Predicated region
      $region105: #{tpu_custom_call.1} parent=5 // pred_check
        %p986 = pneg %p985
      $region106: #{tpu_custom_call.1} parent=5 // pred_check_branch
        %988 = sbr.rel (%p986) target = $region108
      $region107: #{tpu_custom_call.1} parent=5 // pred_region
        %s989 = ssub.s32 %s31, 2
        // Predicated region
        $region109: #{tpu_custom_call.1} parent=107 // pred_check
          %p990 = pneg %p361
        $region110: #{tpu_custom_call.1} parent=107 // pred_check_branch
          %992 = sbr.rel (%p990) target = $region112
        $region111: #{tpu_custom_call.1} parent=107 // pred_region
          %s993 = sand.u32 %s346, 1
          %s994 = scalar_lea.sflag [#allocation5], %s993
          %s995 = sand.u32 %s346, 1
          %s996 = smul.addr %s995, 16
          %s997 = scalar_lea.vmem [#allocation16], %s996
          %999 = dma.done %s994, 256
        $region112: #{tpu_custom_call.1} parent=107 // pred_fallthru
          _
      $region108: #{tpu_custom_call.1} parent=5 // pred_fallthru
        _
    $region6: #{tpu_custom_call.1} parent=1 // loop_footer
      %s35 = sadd.s32 1, %s31
    $region7: #{tpu_custom_call.1} parent=1 // loop_footer_branch
      %30 = sbr.rel target = $region3
    $region8: #{tpu_custom_call.1} parent=1 // loop_exit
      _
    %1000 = vsyncpa [#allocation4], 1
    %s1001 = scalar_lea.sflag [#allocation4], 1
    %1002 = vsyncpa %s1001, 1
    %1003 = vsyncpa [#allocation8], 1
    %s1004 = scalar_lea.sflag [#allocation8], 1
    %1005 = vsyncpa %s1004, 1
    %1006 = vsyncpa [#allocation11], 1
    %1007 = vsyncpa [#allocation14], 1
    %1008 = vsyncpa [#allocation5], 1
    %s1009 = scalar_lea.sflag [#allocation5], 1
    %1010 = vsyncpa %s1009, 1
    %1011 = vsyncpa [#allocation6], 1
    %s1012 = scalar_lea.sflag [#allocation6], 1
    %1013 = vsyncpa %s1012, 1

</llo_original>
